<compile_context>
chip_gen: v6e
topology: v6e:2x2x1
jax: 0.10.0
libtpu: 0.0.40
codegen_flags: <defaults>
</compile_context>

<pallas_src>
import jax
import jax.numpy as jnp
from jax.experimental import pallas as pl
from jax.experimental.pallas import tpu as pltpu

# ----------------------------- configuration ------------------------------
IN_CHANNELS = 4
IMAGE_SIZE = (16, 16)          # (W, H)
PATCH = 4
HIDDEN_DIM = 32
NUM_MIXERS = 2
NUM_CLASSES = 10
TOKEN_DIM = 16
CHANNELS_DIM = 64
DROPOUT = 0.0                  # TODO(synk): dropout is identity at inference (p=0.0 here)

NUM_PATCHES = IMAGE_SIZE[0] * IMAGE_SIZE[1] // PATCH ** 2   # 16
LN_EPS = 1e-5


# ------------------------- math used inside kernels -----------------------
def _erf(x):
    # Abramowitz & Stegun 7.1.26 polynomial erf (|err| < 1.5e-7), exp-only so
    # it lowers cleanly onto the VPU/EUP.
    a1, a2, a3, a4, a5 = (0.254829592, -0.284496736, 1.421413741,
                          -1.453152027, 1.061405429)
    p = 0.3275911
    s = jnp.where(x >= 0.0, 1.0, -1.0)
    ax = jnp.abs(x)
    t = 1.0 / (1.0 + p * ax)
    poly = ((((a5 * t + a4) * t + a3) * t + a2) * t + a1) * t
    return s * (1.0 - poly * jnp.exp(-ax * ax))


def _gelu(x):
    # TODO(synk): torch.nn.GELU uses exact erf; this uses a 1.5e-7-accurate
    # polynomial erf (difference is far below float32 noise for this model).
    return 0.5 * x * (1.0 + _erf(x * 0.7071067811865476))


def _layernorm(x, g, b):
    mu = jnp.mean(x, axis=-1, keepdims=True)
    var = jnp.mean(jnp.square(x - mu), axis=-1, keepdims=True)
    return (x - mu) * jax.lax.rsqrt(var + LN_EPS) * g + b


# ------------------------------- fused kernel -------------------------------
def fused_mixer_kernel(patches_ref, *refs):
    """Entire MLP-Mixer forward for the whole batch in a single invocation.

    patches_ref : (B, P, K) float32, K = C*ps*ps, PyTorch conv-patch order.
    refs[:-1]   : flattened weights (see _flatten_params for the exact order);
                  token-mixing weights arrive pre-transposed so activations
                  are never transposed in-kernel.
    refs[-1]    : output ref, (B, NUM_CLASSES).
    """
    o_ref = refs[-1]
    weight_refs = refs[:-1]
    B, P, K = patches_ref.shape
    D = HIDDEN_DIM

    it = iter(weight_refs)

    def nxt():
        return next(it)[...]

    # ---- patch embedding: one (B*P, K) @ (K, D) GEMM for the whole batch ----
    x = patches_ref[...].reshape(B * P, K)                       # rows: b*P + p
    h = jnp.dot(x, nxt(), preferred_element_type=jnp.float32) + nxt()   # (B*P, D)

    # ---- mixer blocks (Python-unrolled; weights read once each) ----
    for _ in range(NUM_MIXERS):
        ln1g, ln1b = nxt(), nxt()
        tw1t, tb1 = nxt(), nxt()      # (T, P), (T, 1)   -- pre-transposed
        tw2t, tb2 = nxt(), nxt()      # (P, T), (P, 1)   -- pre-transposed
        ln2g, ln2b = nxt(), nxt()
        cw1, cb1 = nxt(), nxt()       # (D, C), (1, C)
        cw2, cb2 = nxt(), nxt()       # (C, D), (1, D)

        # token mixing: LN over D, fold batch into the lane axis -> (P, B*D),
        # contract over P with pre-transposed weights (no activation transpose)
        y = _layernorm(h, ln1g, ln1b)                            # (B*P, D)
        y_fold = jnp.concatenate(
            [y[b * P:(b + 1) * P, :] for b in range(B)], axis=1)  # (P, B*D)
        t = _gelu(jnp.dot(tw1t, y_fold, preferred_element_type=jnp.float32)
                  + tb1)                                         # (T, B*D)
        t = jnp.dot(tw2t, t, preferred_element_type=jnp.float32) + tb2   # (P, B*D)
        t_unfold = jnp.concatenate(
            [t[:, b * D:(b + 1) * D] for b in range(B)], axis=0)  # (B*P, D)
        h = h + t_unfold                                         # residual

        # channel mixing: one batched (B*P, D) @ (D, C) GEMM
        y = _layernorm(h, ln2g, ln2b)
        c = _gelu(jnp.dot(y, cw1, preferred_element_type=jnp.float32) + cb1)
        c = jnp.dot(c, cw2, preferred_element_type=jnp.float32) + cb2
        h = h + c                                                # residual

    # ---- head: LN, mean over patches, Linear, softmax(dim=1) ----
    lng, lnb, fcw, fcb = nxt(), nxt(), nxt(), nxt()
    y = _layernorm(h, lng, lnb)                                  # (B*P, D)
    m = jnp.concatenate(
        [jnp.mean(y[b * P:(b + 1) * P, :], axis=0, keepdims=True)
         for b in range(B)], axis=0)                             # (B, D)
    logits = jnp.dot(m, fcw, preferred_element_type=jnp.float32) + fcb
    z = logits - jnp.max(logits, axis=1, keepdims=True)
    e = jnp.exp(z)
    o_ref[...] = e / jnp.sum(e, axis=1, keepdims=True)


# ------------------------------- wrappers -----------------------------------
def extract_patches(x, ps):
    """NCHW -> (B, P, C*ps*ps) with (c, kh, kw) flattening, matching Conv2d."""
    B, C, H, W = x.shape
    x = x.reshape(B, C, H // ps, ps, W // ps, ps)
    x = x.transpose(0, 2, 4, 1, 3, 5)                   # (B, Hp, Wp, C, ps, ps)
    return x.reshape(B, (H // ps) * (W // ps), C * ps * ps)


def _flatten_params(params):
    """One-time host-side prep: flatten params into kernel-arg order and
    pre-transpose the token-mixing weights (so the kernel never transposes
    activations).  Token biases become column vectors so they broadcast over
    the batch-folded lane axis."""
    flat = [params["embed_w"], params["embed_b"]]
    for blk in params["mixers"]:
        flat += [
            blk["ln1_g"], blk["ln1_b"],
            blk["tok_w1"].T, blk["tok_b1"].reshape(-1, 1),   # (T, P), (T, 1)
            blk["tok_w2"].T, blk["tok_b2"].reshape(-1, 1),   # (P, T), (P, 1)
            blk["ln2_g"], blk["ln2_b"],
            blk["ch_w1"], blk["ch_b1"],
            blk["ch_w2"], blk["ch_b2"],
        ]
    flat += [params["head_ln_g"], params["head_ln_b"],
             params["fc_w"], params["fc_b"]]
    return flat


def mlp_mixer_forward(x, params):
    patches = extract_patches(x, PATCH)                  # (B, P, K)
    B = patches.shape[0]
    flat = _flatten_params(params)
    vmem_spec = pl.BlockSpec(memory_space=pltpu.MemorySpace.VMEM)
    return pl.pallas_call(
        fused_mixer_kernel,
        out_shape=jax.ShapeDtypeStruct((B, NUM_CLASSES), jnp.float32),
        in_specs=[vmem_spec] * (1 + len(flat)),          # whole arrays, loaded once
        out_specs=vmem_spec,
    )(patches, *flat)


# -------------------------- parameters & reference --------------------------
def init_params(key):
    keys = iter(jax.random.split(key, 4 + 8 * NUM_MIXERS))

    def nrm(shape, scale=0.02):
        return scale * jax.random.normal(next(keys), shape, dtype=jnp.float32)

    params = {
        # Conv2d(C, D, ps, stride=ps) == matmul over flattened patches
        "embed_w": nrm((IN_CHANNELS * PATCH * PATCH, HIDDEN_DIM)),
        "embed_b": nrm((1, HIDDEN_DIM)),
        "mixers": [],
        "head_ln_g": jnp.ones((1, HIDDEN_DIM), jnp.float32),
        "head_ln_b": jnp.zeros((1, HIDDEN_DIM), jnp.float32),
        "fc_w": nrm((HIDDEN_DIM, NUM_CLASSES)),
        "fc_b": nrm((1, NUM_CLASSES)),
    }
    for _ in range(NUM_MIXERS):
        params["mixers"].append({
            "ln1_g": jnp.ones((1, HIDDEN_DIM), jnp.float32),
            "ln1_b": jnp.zeros((1, HIDDEN_DIM), jnp.float32),
            "tok_w1": nrm((NUM_PATCHES, TOKEN_DIM)),
            "tok_b1": nrm((1, TOKEN_DIM)),
            "tok_w2": nrm((TOKEN_DIM, NUM_PATCHES)),
            "tok_b2": nrm((1, NUM_PATCHES)),
            "ln2_g": jnp.ones((1, HIDDEN_DIM), jnp.float32),
            "ln2_b": jnp.zeros((1, HIDDEN_DIM), jnp.float32),
            "ch_w1": nrm((HIDDEN_DIM, CHANNELS_DIM)),
            "ch_b1": nrm((1, CHANNELS_DIM)),
            "ch_w2": nrm((CHANNELS_DIM, HIDDEN_DIM)),
            "ch_b2": nrm((1, HIDDEN_DIM)),
        })
    return params


def reference_forward(x, params):
    """Pure-JAX reference mirroring the PyTorch forward (eval mode)."""
    patches = extract_patches(x, PATCH)
    h = patches @ params["embed_w"] + params["embed_b"]
    for blk in params["mixers"]:
        y = _layernorm(h, blk["ln1_g"], blk["ln1_b"])
        yt = jnp.swapaxes(y, 1, 2)
        t = _gelu(yt @ blk["tok_w1"] + blk["tok_b1"]) @ blk["tok_w2"] + blk["tok_b2"]
        h = h + jnp.swapaxes(t, 1, 2)
        y = _layernorm(h, blk["ln2_g"], blk["ln2_b"])
        c = _gelu(y @ blk["ch_w1"] + blk["ch_b1"]) @ blk["ch_w2"] + blk["ch_b2"]
        h = h + c
    y = _layernorm(h, params["head_ln_g"], params["head_ln_b"])
    m = jnp.mean(y, axis=1)
    logits = m @ params["fc_w"] + params["fc_b"]
    return jax.nn.softmax(logits, axis=1)


# ---------------------------------- main ------------------------------------
if __name__ == "__main__":
    # NOTE: 'highest' matmul precision intentionally NOT set (perf review):
    # it forces a multi-pass f32 MXU decomposition; default precision with
    # f32 accumulation is plenty for this model / tolerance.
    key = jax.random.PRNGKey(0)
    k_x, k_p = jax.random.split(key)
    B = 2
    x = jax.random.normal(k_x, (B, IN_CHANNELS, IMAGE_SIZE[1], IMAGE_SIZE[0]),
                          dtype=jnp.float32)
    params = init_params(k_p)

    out = mlp_mixer_forward(x, params)
    out = jax.block_until_ready(out)

    ref = reference_forward(x, params)

    assert out.shape == (B, NUM_CLASSES), out.shape
    assert bool(jnp.all(jnp.isfinite(out)))
    assert bool(jnp.allclose(jnp.sum(out, axis=1), 1.0, atol=1e-5))
    assert bool(jnp.allclose(out, ref, atol=5e-3, rtol=5e-2))

    print("KERNEL_OK")
</pallas_src>

<mosaic_0001>
module attributes {stable_mosaic.version = 11 : i64} {
  func.func @fused_mixer_kernel(%arg0: memref<2x16x64xf32, #tpu.memory_space<vmem>>, %arg1: memref<64x32xf32, #tpu.memory_space<vmem>>, %arg2: memref<1x32xf32, #tpu.memory_space<vmem>>, %arg3: memref<1x32xf32, #tpu.memory_space<vmem>>, %arg4: memref<1x32xf32, #tpu.memory_space<vmem>>, %arg5: memref<16x16xf32, #tpu.memory_space<vmem>>, %arg6: memref<16x1xf32, #tpu.memory_space<vmem>>, %arg7: memref<16x16xf32, #tpu.memory_space<vmem>>, %arg8: memref<16x1xf32, #tpu.memory_space<vmem>>, %arg9: memref<1x32xf32, #tpu.memory_space<vmem>>, %arg10: memref<1x32xf32, #tpu.memory_space<vmem>>, %arg11: memref<32x64xf32, #tpu.memory_space<vmem>>, %arg12: memref<1x64xf32, #tpu.memory_space<vmem>>, %arg13: memref<64x32xf32, #tpu.memory_space<vmem>>, %arg14: memref<1x32xf32, #tpu.memory_space<vmem>>, %arg15: memref<1x32xf32, #tpu.memory_space<vmem>>, %arg16: memref<1x32xf32, #tpu.memory_space<vmem>>, %arg17: memref<16x16xf32, #tpu.memory_space<vmem>>, %arg18: memref<16x1xf32, #tpu.memory_space<vmem>>, %arg19: memref<16x16xf32, #tpu.memory_space<vmem>>, %arg20: memref<16x1xf32, #tpu.memory_space<vmem>>, %arg21: memref<1x32xf32, #tpu.memory_space<vmem>>, %arg22: memref<1x32xf32, #tpu.memory_space<vmem>>, %arg23: memref<32x64xf32, #tpu.memory_space<vmem>>, %arg24: memref<1x64xf32, #tpu.memory_space<vmem>>, %arg25: memref<64x32xf32, #tpu.memory_space<vmem>>, %arg26: memref<1x32xf32, #tpu.memory_space<vmem>>, %arg27: memref<1x32xf32, #tpu.memory_space<vmem>>, %arg28: memref<1x32xf32, #tpu.memory_space<vmem>>, %arg29: memref<32x10xf32, #tpu.memory_space<vmem>>, %arg30: memref<1x10xf32, #tpu.memory_space<vmem>>, %arg31: memref<2x10xf32, #tpu.memory_space<vmem>>) attributes {dimension_semantics = [], scalar_prefetch = 0 : i64, scratch_operands = 0 : i64, tpu.core_type = #tpu.core_type<tc>} {
    %c0 = arith.constant 0 : index
    %c0_0 = arith.constant 0 : index
    %c0_1 = arith.constant 0 : index
    %0 = vector.load %arg0[%c0, %c0_0, %c0_1] : memref<2x16x64xf32, #tpu.memory_space<vmem>>, vector<2x16x64xf32>
    %1 = vector.shape_cast %0 : vector<2x16x64xf32> to vector<32x64xf32>
    %c0_2 = arith.constant 0 : index
    %c0_3 = arith.constant 0 : index
    %2 = vector.load %arg1[%c0_2, %c0_3] : memref<64x32xf32, #tpu.memory_space<vmem>>, vector<64x32xf32>
    %cst = arith.constant dense<0.000000e+00> : vector<32x32xf32>
    %3 = tpu.matmul %1, %2, %cst {dimension_numbers = #tpu.dot_dimension_numbers<[1], [0], [0], [1], [0, 0, 1, 1], [], []>} : vector<32x64xf32>, vector<64x32xf32>, vector<32x32xf32> -> vector<32x32xf32>
    %c0_4 = arith.constant 0 : index
    %c0_5 = arith.constant 0 : index
    %4 = vector.load %arg2[%c0_4, %c0_5] : memref<1x32xf32, #tpu.memory_space<vmem>>, vector<1x32xf32>
    %5 = vector.broadcast %4 : vector<1x32xf32> to vector<32x32xf32>
    %6 = arith.addf %3, %5 : vector<32x32xf32>
    %c0_6 = arith.constant 0 : index
    %c0_7 = arith.constant 0 : index
    %7 = vector.load %arg3[%c0_6, %c0_7] : memref<1x32xf32, #tpu.memory_space<vmem>>, vector<1x32xf32>
    %c0_8 = arith.constant 0 : index
    %c0_9 = arith.constant 0 : index
    %8 = vector.load %arg4[%c0_8, %c0_9] : memref<1x32xf32, #tpu.memory_space<vmem>>, vector<1x32xf32>
    %c0_10 = arith.constant 0 : index
    %c0_11 = arith.constant 0 : index
    %9 = vector.load %arg5[%c0_10, %c0_11] : memref<16x16xf32, #tpu.memory_space<vmem>>, vector<16x16xf32>
    %c0_12 = arith.constant 0 : index
    %c0_13 = arith.constant 0 : index
    %10 = vector.load %arg6[%c0_12, %c0_13] : memref<16x1xf32, #tpu.memory_space<vmem>>, vector<16x1xf32>
    %c0_14 = arith.constant 0 : index
    %c0_15 = arith.constant 0 : index
    %11 = vector.load %arg7[%c0_14, %c0_15] : memref<16x16xf32, #tpu.memory_space<vmem>>, vector<16x16xf32>
    %c0_16 = arith.constant 0 : index
    %c0_17 = arith.constant 0 : index
    %12 = vector.load %arg8[%c0_16, %c0_17] : memref<16x1xf32, #tpu.memory_space<vmem>>, vector<16x1xf32>
    %c0_18 = arith.constant 0 : index
    %c0_19 = arith.constant 0 : index
    %13 = vector.load %arg9[%c0_18, %c0_19] : memref<1x32xf32, #tpu.memory_space<vmem>>, vector<1x32xf32>
    %c0_20 = arith.constant 0 : index
    %c0_21 = arith.constant 0 : index
    %14 = vector.load %arg10[%c0_20, %c0_21] : memref<1x32xf32, #tpu.memory_space<vmem>>, vector<1x32xf32>
    %c0_22 = arith.constant 0 : index
    %c0_23 = arith.constant 0 : index
    %15 = vector.load %arg11[%c0_22, %c0_23] : memref<32x64xf32, #tpu.memory_space<vmem>>, vector<32x64xf32>
    %c0_24 = arith.constant 0 : index
    %c0_25 = arith.constant 0 : index
    %16 = vector.load %arg12[%c0_24, %c0_25] : memref<1x64xf32, #tpu.memory_space<vmem>>, vector<1x64xf32>
    %c0_26 = arith.constant 0 : index
    %c0_27 = arith.constant 0 : index
    %17 = vector.load %arg13[%c0_26, %c0_27] : memref<64x32xf32, #tpu.memory_space<vmem>>, vector<64x32xf32>
    %c0_28 = arith.constant 0 : index
    %c0_29 = arith.constant 0 : index
    %18 = vector.load %arg14[%c0_28, %c0_29] : memref<1x32xf32, #tpu.memory_space<vmem>>, vector<1x32xf32>
    %cst_30 = arith.constant dense<0.000000e+00> : vector<32xf32>
    %19 = vector.multi_reduction <add>, %6, %cst_30 [1] : vector<32x32xf32> to vector<32xf32>
    %20 = vector.shape_cast %19 : vector<32xf32> to vector<32x1xf32>
    %cst_31 = arith.constant 3.200000e+01 : f32
    %21 = vector.broadcast %cst_31 : f32 to vector<32x1xf32>
    %22 = arith.divf %20, %21 : vector<32x1xf32>
    %23 = vector.broadcast %22 : vector<32x1xf32> to vector<32x32xf32>
    %24 = arith.subf %6, %23 : vector<32x32xf32>
    %25 = arith.mulf %24, %24 : vector<32x32xf32>
    %cst_32 = arith.constant dense<0.000000e+00> : vector<32xf32>
    %26 = vector.multi_reduction <add>, %25, %cst_32 [1] : vector<32x32xf32> to vector<32xf32>
    %27 = vector.shape_cast %26 : vector<32xf32> to vector<32x1xf32>
    %cst_33 = arith.constant 3.200000e+01 : f32
    %28 = vector.broadcast %cst_33 : f32 to vector<32x1xf32>
    %29 = arith.divf %27, %28 : vector<32x1xf32>
    %30 = vector.broadcast %22 : vector<32x1xf32> to vector<32x32xf32>
    %31 = arith.subf %6, %30 : vector<32x32xf32>
    %cst_34 = arith.constant 9.99999974E-6 : f32
    %32 = vector.broadcast %cst_34 : f32 to vector<32x1xf32>
    %33 = arith.addf %29, %32 : vector<32x1xf32>
    %34 = math.rsqrt %33 : vector<32x1xf32>
    %35 = vector.broadcast %34 : vector<32x1xf32> to vector<32x32xf32>
    %36 = arith.mulf %31, %35 : vector<32x32xf32>
    %37 = vector.broadcast %7 : vector<1x32xf32> to vector<32x32xf32>
    %38 = arith.mulf %36, %37 : vector<32x32xf32>
    %39 = vector.broadcast %8 : vector<1x32xf32> to vector<32x32xf32>
    %40 = arith.addf %38, %39 : vector<32x32xf32>
    %41 = vector.extract_strided_slice %40 {offsets = [0, 0], sizes = [16, 32], strides = [1, 1]} : vector<32x32xf32> to vector<16x32xf32>
    %42 = vector.extract_strided_slice %40 {offsets = [16, 0], sizes = [16, 32], strides = [1, 1]} : vector<32x32xf32> to vector<16x32xf32>
    %43 = tpu.concatenate %41, %42 in 1 : vector<16x32xf32>, vector<16x32xf32> -> vector<16x64xf32>
    %cst_35 = arith.constant dense<0.000000e+00> : vector<16x64xf32>
    %44 = tpu.matmul %9, %43, %cst_35 {dimension_numbers = #tpu.dot_dimension_numbers<[1], [0], [0], [1], [0, 0, 1, 1], [], []>} : vector<16x16xf32>, vector<16x64xf32>, vector<16x64xf32> -> vector<16x64xf32>
    %45 = vector.broadcast %10 : vector<16x1xf32> to vector<16x64xf32>
    %46 = arith.addf %44, %45 : vector<16x64xf32>
    %cst_36 = arith.constant 5.000000e-01 : f32
    %47 = vector.broadcast %cst_36 : f32 to vector<16x64xf32>
    %48 = arith.mulf %47, %46 : vector<16x64xf32>
    %cst_37 = arith.constant 0.707106769 : f32
    %49 = vector.broadcast %cst_37 : f32 to vector<16x64xf32>
    %50 = arith.mulf %46, %49 : vector<16x64xf32>
    %cst_38 = arith.constant 0.000000e+00 : f32
    %51 = vector.broadcast %cst_38 : f32 to vector<16x64xf32>
    %52 = arith.cmpf oge, %50, %51 : vector<16x64xf32>
    %cst_39 = arith.constant 1.000000e+00 : f32
    %cst_40 = arith.constant -1.000000e+00 : f32
    %53 = vector.broadcast %cst_39 : f32 to vector<16x64xf32>
    %54 = vector.broadcast %cst_40 : f32 to vector<16x64xf32>
    %55 = arith.select %52, %53, %54 : vector<16x64xi1>, vector<16x64xf32>
    %56 = math.absf %50 : vector<16x64xf32>
    %cst_41 = arith.constant 0.327591091 : f32
    %57 = vector.broadcast %cst_41 : f32 to vector<16x64xf32>
    %58 = arith.mulf %57, %56 : vector<16x64xf32>
    %cst_42 = arith.constant 1.000000e+00 : f32
    %59 = vector.broadcast %cst_42 : f32 to vector<16x64xf32>
    %60 = arith.addf %59, %58 : vector<16x64xf32>
    %cst_43 = arith.constant 1.000000e+00 : f32
    %61 = vector.broadcast %cst_43 : f32 to vector<16x64xf32>
    %62 = arith.divf %61, %60 : vector<16x64xf32>
    %cst_44 = arith.constant 1.06140542 : f32
    %63 = vector.broadcast %cst_44 : f32 to vector<16x64xf32>
    %64 = arith.mulf %63, %62 : vector<16x64xf32>
    %cst_45 = arith.constant -1.45315206 : f32
    %65 = vector.broadcast %cst_45 : f32 to vector<16x64xf32>
    %66 = arith.addf %64, %65 : vector<16x64xf32>
    %67 = arith.mulf %66, %62 : vector<16x64xf32>
    %cst_46 = arith.constant 1.42141378 : f32
    %68 = vector.broadcast %cst_46 : f32 to vector<16x64xf32>
    %69 = arith.addf %67, %68 : vector<16x64xf32>
    %70 = arith.mulf %69, %62 : vector<16x64xf32>
    %cst_47 = arith.constant -0.284496725 : f32
    %71 = vector.broadcast %cst_47 : f32 to vector<16x64xf32>
    %72 = arith.addf %70, %71 : vector<16x64xf32>
    %73 = arith.mulf %72, %62 : vector<16x64xf32>
    %cst_48 = arith.constant 0.254829586 : f32
    %74 = vector.broadcast %cst_48 : f32 to vector<16x64xf32>
    %75 = arith.addf %73, %74 : vector<16x64xf32>
    %76 = arith.mulf %75, %62 : vector<16x64xf32>
    %cst_49 = arith.constant 0.000000e+00 : f32
    %77 = vector.broadcast %cst_49 : f32 to vector<16x64xf32>
    %78 = arith.subf %77, %56 : vector<16x64xf32>
    %79 = arith.mulf %78, %56 : vector<16x64xf32>
    %80 = math.exp %79 : vector<16x64xf32>
    %81 = arith.mulf %76, %80 : vector<16x64xf32>
    %cst_50 = arith.constant 1.000000e+00 : f32
    %82 = vector.broadcast %cst_50 : f32 to vector<16x64xf32>
    %83 = arith.subf %82, %81 : vector<16x64xf32>
    %84 = arith.mulf %55, %83 : vector<16x64xf32>
    %cst_51 = arith.constant 1.000000e+00 : f32
    %85 = vector.broadcast %cst_51 : f32 to vector<16x64xf32>
    %86 = arith.addf %85, %84 : vector<16x64xf32>
    %87 = arith.mulf %48, %86 : vector<16x64xf32>
    %cst_52 = arith.constant dense<0.000000e+00> : vector<16x64xf32>
    %88 = tpu.matmul %11, %87, %cst_52 {dimension_numbers = #tpu.dot_dimension_numbers<[1], [0], [0], [1], [0, 0, 1, 1], [], []>} : vector<16x16xf32>, vector<16x64xf32>, vector<16x64xf32> -> vector<16x64xf32>
    %89 = vector.broadcast %12 : vector<16x1xf32> to vector<16x64xf32>
    %90 = arith.addf %88, %89 : vector<16x64xf32>
    %91 = vector.extract_strided_slice %90 {offsets = [0, 0], sizes = [16, 32], strides = [1, 1]} : vector<16x64xf32> to vector<16x32xf32>
    %92 = vector.extract_strided_slice %90 {offsets = [0, 32], sizes = [16, 32], strides = [1, 1]} : vector<16x64xf32> to vector<16x32xf32>
    %93 = tpu.concatenate %91, %92 in 0 : vector<16x32xf32>, vector<16x32xf32> -> vector<32x32xf32>
    %94 = arith.addf %6, %93 : vector<32x32xf32>
    %cst_53 = arith.constant dense<0.000000e+00> : vector<32xf32>
    %95 = vector.multi_reduction <add>, %94, %cst_53 [1] : vector<32x32xf32> to vector<32xf32>
    %96 = vector.shape_cast %95 : vector<32xf32> to vector<32x1xf32>
    %cst_54 = arith.constant 3.200000e+01 : f32
    %97 = vector.broadcast %cst_54 : f32 to vector<32x1xf32>
    %98 = arith.divf %96, %97 : vector<32x1xf32>
    %99 = vector.broadcast %98 : vector<32x1xf32> to vector<32x32xf32>
    %100 = arith.subf %94, %99 : vector<32x32xf32>
    %101 = arith.mulf %100, %100 : vector<32x32xf32>
    %cst_55 = arith.constant dense<0.000000e+00> : vector<32xf32>
    %102 = vector.multi_reduction <add>, %101, %cst_55 [1] : vector<32x32xf32> to vector<32xf32>
    %103 = vector.shape_cast %102 : vector<32xf32> to vector<32x1xf32>
    %cst_56 = arith.constant 3.200000e+01 : f32
    %104 = vector.broadcast %cst_56 : f32 to vector<32x1xf32>
    %105 = arith.divf %103, %104 : vector<32x1xf32>
    %106 = vector.broadcast %98 : vector<32x1xf32> to vector<32x32xf32>
    %107 = arith.subf %94, %106 : vector<32x32xf32>
    %cst_57 = arith.constant 9.99999974E-6 : f32
    %108 = vector.broadcast %cst_57 : f32 to vector<32x1xf32>
    %109 = arith.addf %105, %108 : vector<32x1xf32>
    %110 = math.rsqrt %109 : vector<32x1xf32>
    %111 = vector.broadcast %110 : vector<32x1xf32> to vector<32x32xf32>
    %112 = arith.mulf %107, %111 : vector<32x32xf32>
    %113 = vector.broadcast %13 : vector<1x32xf32> to vector<32x32xf32>
    %114 = arith.mulf %112, %113 : vector<32x32xf32>
    %115 = vector.broadcast %14 : vector<1x32xf32> to vector<32x32xf32>
    %116 = arith.addf %114, %115 : vector<32x32xf32>
    %cst_58 = arith.constant dense<0.000000e+00> : vector<32x64xf32>
    %117 = tpu.matmul %116, %15, %cst_58 {dimension_numbers = #tpu.dot_dimension_numbers<[1], [0], [0], [1], [0, 0, 1, 1], [], []>} : vector<32x32xf32>, vector<32x64xf32>, vector<32x64xf32> -> vector<32x64xf32>
    %118 = vector.broadcast %16 : vector<1x64xf32> to vector<32x64xf32>
    %119 = arith.addf %117, %118 : vector<32x64xf32>
    %cst_59 = arith.constant 5.000000e-01 : f32
    %120 = vector.broadcast %cst_59 : f32 to vector<32x64xf32>
    %121 = arith.mulf %120, %119 : vector<32x64xf32>
    %cst_60 = arith.constant 0.707106769 : f32
    %122 = vector.broadcast %cst_60 : f32 to vector<32x64xf32>
    %123 = arith.mulf %119, %122 : vector<32x64xf32>
    %cst_61 = arith.constant 0.000000e+00 : f32
    %124 = vector.broadcast %cst_61 : f32 to vector<32x64xf32>
    %125 = arith.cmpf oge, %123, %124 : vector<32x64xf32>
    %cst_62 = arith.constant 1.000000e+00 : f32
    %cst_63 = arith.constant -1.000000e+00 : f32
    %126 = vector.broadcast %cst_62 : f32 to vector<32x64xf32>
    %127 = vector.broadcast %cst_63 : f32 to vector<32x64xf32>
    %128 = arith.select %125, %126, %127 : vector<32x64xi1>, vector<32x64xf32>
    %129 = math.absf %123 : vector<32x64xf32>
    %cst_64 = arith.constant 0.327591091 : f32
    %130 = vector.broadcast %cst_64 : f32 to vector<32x64xf32>
    %131 = arith.mulf %130, %129 : vector<32x64xf32>
    %cst_65 = arith.constant 1.000000e+00 : f32
    %132 = vector.broadcast %cst_65 : f32 to vector<32x64xf32>
    %133 = arith.addf %132, %131 : vector<32x64xf32>
    %cst_66 = arith.constant 1.000000e+00 : f32
    %134 = vector.broadcast %cst_66 : f32 to vector<32x64xf32>
    %135 = arith.divf %134, %133 : vector<32x64xf32>
    %cst_67 = arith.constant 1.06140542 : f32
    %136 = vector.broadcast %cst_67 : f32 to vector<32x64xf32>
    %137 = arith.mulf %136, %135 : vector<32x64xf32>
    %cst_68 = arith.constant -1.45315206 : f32
    %138 = vector.broadcast %cst_68 : f32 to vector<32x64xf32>
    %139 = arith.addf %137, %138 : vector<32x64xf32>
    %140 = arith.mulf %139, %135 : vector<32x64xf32>
    %cst_69 = arith.constant 1.42141378 : f32
    %141 = vector.broadcast %cst_69 : f32 to vector<32x64xf32>
    %142 = arith.addf %140, %141 : vector<32x64xf32>
    %143 = arith.mulf %142, %135 : vector<32x64xf32>
    %cst_70 = arith.constant -0.284496725 : f32
    %144 = vector.broadcast %cst_70 : f32 to vector<32x64xf32>
    %145 = arith.addf %143, %144 : vector<32x64xf32>
    %146 = arith.mulf %145, %135 : vector<32x64xf32>
    %cst_71 = arith.constant 0.254829586 : f32
    %147 = vector.broadcast %cst_71 : f32 to vector<32x64xf32>
    %148 = arith.addf %146, %147 : vector<32x64xf32>
    %149 = arith.mulf %148, %135 : vector<32x64xf32>
    %cst_72 = arith.constant 0.000000e+00 : f32
    %150 = vector.broadcast %cst_72 : f32 to vector<32x64xf32>
    %151 = arith.subf %150, %129 : vector<32x64xf32>
    %152 = arith.mulf %151, %129 : vector<32x64xf32>
    %153 = math.exp %152 : vector<32x64xf32>
    %154 = arith.mulf %149, %153 : vector<32x64xf32>
    %cst_73 = arith.constant 1.000000e+00 : f32
    %155 = vector.broadcast %cst_73 : f32 to vector<32x64xf32>
    %156 = arith.subf %155, %154 : vector<32x64xf32>
    %157 = arith.mulf %128, %156 : vector<32x64xf32>
    %cst_74 = arith.constant 1.000000e+00 : f32
    %158 = vector.broadcast %cst_74 : f32 to vector<32x64xf32>
    %159 = arith.addf %158, %157 : vector<32x64xf32>
    %160 = arith.mulf %121, %159 : vector<32x64xf32>
    %cst_75 = arith.constant dense<0.000000e+00> : vector<32x32xf32>
    %161 = tpu.matmul %160, %17, %cst_75 {dimension_numbers = #tpu.dot_dimension_numbers<[1], [0], [0], [1], [0, 0, 1, 1], [], []>} : vector<32x64xf32>, vector<64x32xf32>, vector<32x32xf32> -> vector<32x32xf32>
    %162 = vector.broadcast %18 : vector<1x32xf32> to vector<32x32xf32>
    %163 = arith.addf %161, %162 : vector<32x32xf32>
    %164 = arith.addf %94, %163 : vector<32x32xf32>
    %c0_76 = arith.constant 0 : index
    %c0_77 = arith.constant 0 : index
    %165 = vector.load %arg15[%c0_76, %c0_77] : memref<1x32xf32, #tpu.memory_space<vmem>>, vector<1x32xf32>
    %c0_78 = arith.constant 0 : index
    %c0_79 = arith.constant 0 : index
    %166 = vector.load %arg16[%c0_78, %c0_79] : memref<1x32xf32, #tpu.memory_space<vmem>>, vector<1x32xf32>
    %c0_80 = arith.constant 0 : index
    %c0_81 = arith.constant 0 : index
    %167 = vector.load %arg17[%c0_80, %c0_81] : memref<16x16xf32, #tpu.memory_space<vmem>>, vector<16x16xf32>
    %c0_82 = arith.constant 0 : index
    %c0_83 = arith.constant 0 : index
    %168 = vector.load %arg18[%c0_82, %c0_83] : memref<16x1xf32, #tpu.memory_space<vmem>>, vector<16x1xf32>
    %c0_84 = arith.constant 0 : index
    %c0_85 = arith.constant 0 : index
    %169 = vector.load %arg19[%c0_84, %c0_85] : memref<16x16xf32, #tpu.memory_space<vmem>>, vector<16x16xf32>
    %c0_86 = arith.constant 0 : index
    %c0_87 = arith.constant 0 : index
    %170 = vector.load %arg20[%c0_86, %c0_87] : memref<16x1xf32, #tpu.memory_space<vmem>>, vector<16x1xf32>
    %c0_88 = arith.constant 0 : index
    %c0_89 = arith.constant 0 : index
    %171 = vector.load %arg21[%c0_88, %c0_89] : memref<1x32xf32, #tpu.memory_space<vmem>>, vector<1x32xf32>
    %c0_90 = arith.constant 0 : index
    %c0_91 = arith.constant 0 : index
    %172 = vector.load %arg22[%c0_90, %c0_91] : memref<1x32xf32, #tpu.memory_space<vmem>>, vector<1x32xf32>
    %c0_92 = arith.constant 0 : index
    %c0_93 = arith.constant 0 : index
    %173 = vector.load %arg23[%c0_92, %c0_93] : memref<32x64xf32, #tpu.memory_space<vmem>>, vector<32x64xf32>
    %c0_94 = arith.constant 0 : index
    %c0_95 = arith.constant 0 : index
    %174 = vector.load %arg24[%c0_94, %c0_95] : memref<1x64xf32, #tpu.memory_space<vmem>>, vector<1x64xf32>
    %c0_96 = arith.constant 0 : index
    %c0_97 = arith.constant 0 : index
    %175 = vector.load %arg25[%c0_96, %c0_97] : memref<64x32xf32, #tpu.memory_space<vmem>>, vector<64x32xf32>
    %c0_98 = arith.constant 0 : index
    %c0_99 = arith.constant 0 : index
    %176 = vector.load %arg26[%c0_98, %c0_99] : memref<1x32xf32, #tpu.memory_space<vmem>>, vector<1x32xf32>
    %cst_100 = arith.constant dense<0.000000e+00> : vector<32xf32>
    %177 = vector.multi_reduction <add>, %164, %cst_100 [1] : vector<32x32xf32> to vector<32xf32>
    %178 = vector.shape_cast %177 : vector<32xf32> to vector<32x1xf32>
    %cst_101 = arith.constant 3.200000e+01 : f32
    %179 = vector.broadcast %cst_101 : f32 to vector<32x1xf32>
    %180 = arith.divf %178, %179 : vector<32x1xf32>
    %181 = vector.broadcast %180 : vector<32x1xf32> to vector<32x32xf32>
    %182 = arith.subf %164, %181 : vector<32x32xf32>
    %183 = arith.mulf %182, %182 : vector<32x32xf32>
    %cst_102 = arith.constant dense<0.000000e+00> : vector<32xf32>
    %184 = vector.multi_reduction <add>, %183, %cst_102 [1] : vector<32x32xf32> to vector<32xf32>
    %185 = vector.shape_cast %184 : vector<32xf32> to vector<32x1xf32>
    %cst_103 = arith.constant 3.200000e+01 : f32
    %186 = vector.broadcast %cst_103 : f32 to vector<32x1xf32>
    %187 = arith.divf %185, %186 : vector<32x1xf32>
    %188 = vector.broadcast %180 : vector<32x1xf32> to vector<32x32xf32>
    %189 = arith.subf %164, %188 : vector<32x32xf32>
    %cst_104 = arith.constant 9.99999974E-6 : f32
    %190 = vector.broadcast %cst_104 : f32 to vector<32x1xf32>
    %191 = arith.addf %187, %190 : vector<32x1xf32>
    %192 = math.rsqrt %191 : vector<32x1xf32>
    %193 = vector.broadcast %192 : vector<32x1xf32> to vector<32x32xf32>
    %194 = arith.mulf %189, %193 : vector<32x32xf32>
    %195 = vector.broadcast %165 : vector<1x32xf32> to vector<32x32xf32>
    %196 = arith.mulf %194, %195 : vector<32x32xf32>
    %197 = vector.broadcast %166 : vector<1x32xf32> to vector<32x32xf32>
    %198 = arith.addf %196, %197 : vector<32x32xf32>
    %199 = vector.extract_strided_slice %198 {offsets = [0, 0], sizes = [16, 32], strides = [1, 1]} : vector<32x32xf32> to vector<16x32xf32>
    %200 = vector.extract_strided_slice %198 {offsets = [16, 0], sizes = [16, 32], strides = [1, 1]} : vector<32x32xf32> to vector<16x32xf32>
    %201 = tpu.concatenate %199, %200 in 1 : vector<16x32xf32>, vector<16x32xf32> -> vector<16x64xf32>
    %cst_105 = arith.constant dense<0.000000e+00> : vector<16x64xf32>
    %202 = tpu.matmul %167, %201, %cst_105 {dimension_numbers = #tpu.dot_dimension_numbers<[1], [0], [0], [1], [0, 0, 1, 1], [], []>} : vector<16x16xf32>, vector<16x64xf32>, vector<16x64xf32> -> vector<16x64xf32>
    %203 = vector.broadcast %168 : vector<16x1xf32> to vector<16x64xf32>
    %204 = arith.addf %202, %203 : vector<16x64xf32>
    %cst_106 = arith.constant 5.000000e-01 : f32
    %205 = vector.broadcast %cst_106 : f32 to vector<16x64xf32>
    %206 = arith.mulf %205, %204 : vector<16x64xf32>
    %cst_107 = arith.constant 0.707106769 : f32
    %207 = vector.broadcast %cst_107 : f32 to vector<16x64xf32>
    %208 = arith.mulf %204, %207 : vector<16x64xf32>
    %cst_108 = arith.constant 0.000000e+00 : f32
    %209 = vector.broadcast %cst_108 : f32 to vector<16x64xf32>
    %210 = arith.cmpf oge, %208, %209 : vector<16x64xf32>
    %cst_109 = arith.constant 1.000000e+00 : f32
    %cst_110 = arith.constant -1.000000e+00 : f32
    %211 = vector.broadcast %cst_109 : f32 to vector<16x64xf32>
    %212 = vector.broadcast %cst_110 : f32 to vector<16x64xf32>
    %213 = arith.select %210, %211, %212 : vector<16x64xi1>, vector<16x64xf32>
    %214 = math.absf %208 : vector<16x64xf32>
    %cst_111 = arith.constant 0.327591091 : f32
    %215 = vector.broadcast %cst_111 : f32 to vector<16x64xf32>
    %216 = arith.mulf %215, %214 : vector<16x64xf32>
    %cst_112 = arith.constant 1.000000e+00 : f32
    %217 = vector.broadcast %cst_112 : f32 to vector<16x64xf32>
    %218 = arith.addf %217, %216 : vector<16x64xf32>
    %cst_113 = arith.constant 1.000000e+00 : f32
    %219 = vector.broadcast %cst_113 : f32 to vector<16x64xf32>
    %220 = arith.divf %219, %218 : vector<16x64xf32>
    %cst_114 = arith.constant 1.06140542 : f32
    %221 = vector.broadcast %cst_114 : f32 to vector<16x64xf32>
    %222 = arith.mulf %221, %220 : vector<16x64xf32>
    %cst_115 = arith.constant -1.45315206 : f32
    %223 = vector.broadcast %cst_115 : f32 to vector<16x64xf32>
    %224 = arith.addf %222, %223 : vector<16x64xf32>
    %225 = arith.mulf %224, %220 : vector<16x64xf32>
    %cst_116 = arith.constant 1.42141378 : f32
    %226 = vector.broadcast %cst_116 : f32 to vector<16x64xf32>
    %227 = arith.addf %225, %226 : vector<16x64xf32>
    %228 = arith.mulf %227, %220 : vector<16x64xf32>
    %cst_117 = arith.constant -0.284496725 : f32
    %229 = vector.broadcast %cst_117 : f32 to vector<16x64xf32>
    %230 = arith.addf %228, %229 : vector<16x64xf32>
    %231 = arith.mulf %230, %220 : vector<16x64xf32>
    %cst_118 = arith.constant 0.254829586 : f32
    %232 = vector.broadcast %cst_118 : f32 to vector<16x64xf32>
    %233 = arith.addf %231, %232 : vector<16x64xf32>
    %234 = arith.mulf %233, %220 : vector<16x64xf32>
    %cst_119 = arith.constant 0.000000e+00 : f32
    %235 = vector.broadcast %cst_119 : f32 to vector<16x64xf32>
    %236 = arith.subf %235, %214 : vector<16x64xf32>
    %237 = arith.mulf %236, %214 : vector<16x64xf32>
    %238 = math.exp %237 : vector<16x64xf32>
    %239 = arith.mulf %234, %238 : vector<16x64xf32>
    %cst_120 = arith.constant 1.000000e+00 : f32
    %240 = vector.broadcast %cst_120 : f32 to vector<16x64xf32>
    %241 = arith.subf %240, %239 : vector<16x64xf32>
    %242 = arith.mulf %213, %241 : vector<16x64xf32>
    %cst_121 = arith.constant 1.000000e+00 : f32
    %243 = vector.broadcast %cst_121 : f32 to vector<16x64xf32>
    %244 = arith.addf %243, %242 : vector<16x64xf32>
    %245 = arith.mulf %206, %244 : vector<16x64xf32>
    %cst_122 = arith.constant dense<0.000000e+00> : vector<16x64xf32>
    %246 = tpu.matmul %169, %245, %cst_122 {dimension_numbers = #tpu.dot_dimension_numbers<[1], [0], [0], [1], [0, 0, 1, 1], [], []>} : vector<16x16xf32>, vector<16x64xf32>, vector<16x64xf32> -> vector<16x64xf32>
    %247 = vector.broadcast %170 : vector<16x1xf32> to vector<16x64xf32>
    %248 = arith.addf %246, %247 : vector<16x64xf32>
    %249 = vector.extract_strided_slice %248 {offsets = [0, 0], sizes = [16, 32], strides = [1, 1]} : vector<16x64xf32> to vector<16x32xf32>
    %250 = vector.extract_strided_slice %248 {offsets = [0, 32], sizes = [16, 32], strides = [1, 1]} : vector<16x64xf32> to vector<16x32xf32>
    %251 = tpu.concatenate %249, %250 in 0 : vector<16x32xf32>, vector<16x32xf32> -> vector<32x32xf32>
    %252 = arith.addf %164, %251 : vector<32x32xf32>
    %cst_123 = arith.constant dense<0.000000e+00> : vector<32xf32>
    %253 = vector.multi_reduction <add>, %252, %cst_123 [1] : vector<32x32xf32> to vector<32xf32>
    %254 = vector.shape_cast %253 : vector<32xf32> to vector<32x1xf32>
    %cst_124 = arith.constant 3.200000e+01 : f32
    %255 = vector.broadcast %cst_124 : f32 to vector<32x1xf32>
    %256 = arith.divf %254, %255 : vector<32x1xf32>
    %257 = vector.broadcast %256 : vector<32x1xf32> to vector<32x32xf32>
    %258 = arith.subf %252, %257 : vector<32x32xf32>
    %259 = arith.mulf %258, %258 : vector<32x32xf32>
    %cst_125 = arith.constant dense<0.000000e+00> : vector<32xf32>
    %260 = vector.multi_reduction <add>, %259, %cst_125 [1] : vector<32x32xf32> to vector<32xf32>
    %261 = vector.shape_cast %260 : vector<32xf32> to vector<32x1xf32>
    %cst_126 = arith.constant 3.200000e+01 : f32
    %262 = vector.broadcast %cst_126 : f32 to vector<32x1xf32>
    %263 = arith.divf %261, %262 : vector<32x1xf32>
    %264 = vector.broadcast %256 : vector<32x1xf32> to vector<32x32xf32>
    %265 = arith.subf %252, %264 : vector<32x32xf32>
    %cst_127 = arith.constant 9.99999974E-6 : f32
    %266 = vector.broadcast %cst_127 : f32 to vector<32x1xf32>
    %267 = arith.addf %263, %266 : vector<32x1xf32>
    %268 = math.rsqrt %267 : vector<32x1xf32>
    %269 = vector.broadcast %268 : vector<32x1xf32> to vector<32x32xf32>
    %270 = arith.mulf %265, %269 : vector<32x32xf32>
    %271 = vector.broadcast %171 : vector<1x32xf32> to vector<32x32xf32>
    %272 = arith.mulf %270, %271 : vector<32x32xf32>
    %273 = vector.broadcast %172 : vector<1x32xf32> to vector<32x32xf32>
    %274 = arith.addf %272, %273 : vector<32x32xf32>
    %cst_128 = arith.constant dense<0.000000e+00> : vector<32x64xf32>
    %275 = tpu.matmul %274, %173, %cst_128 {dimension_numbers = #tpu.dot_dimension_numbers<[1], [0], [0], [1], [0, 0, 1, 1], [], []>} : vector<32x32xf32>, vector<32x64xf32>, vector<32x64xf32> -> vector<32x64xf32>
    %276 = vector.broadcast %174 : vector<1x64xf32> to vector<32x64xf32>
    %277 = arith.addf %275, %276 : vector<32x64xf32>
    %cst_129 = arith.constant 5.000000e-01 : f32
    %278 = vector.broadcast %cst_129 : f32 to vector<32x64xf32>
    %279 = arith.mulf %278, %277 : vector<32x64xf32>
    %cst_130 = arith.constant 0.707106769 : f32
    %280 = vector.broadcast %cst_130 : f32 to vector<32x64xf32>
    %281 = arith.mulf %277, %280 : vector<32x64xf32>
    %cst_131 = arith.constant 0.000000e+00 : f32
    %282 = vector.broadcast %cst_131 : f32 to vector<32x64xf32>
    %283 = arith.cmpf oge, %281, %282 : vector<32x64xf32>
    %cst_132 = arith.constant 1.000000e+00 : f32
    %cst_133 = arith.constant -1.000000e+00 : f32
    %284 = vector.broadcast %cst_132 : f32 to vector<32x64xf32>
    %285 = vector.broadcast %cst_133 : f32 to vector<32x64xf32>
    %286 = arith.select %283, %284, %285 : vector<32x64xi1>, vector<32x64xf32>
    %287 = math.absf %281 : vector<32x64xf32>
    %cst_134 = arith.constant 0.327591091 : f32
    %288 = vector.broadcast %cst_134 : f32 to vector<32x64xf32>
    %289 = arith.mulf %288, %287 : vector<32x64xf32>
    %cst_135 = arith.constant 1.000000e+00 : f32
    %290 = vector.broadcast %cst_135 : f32 to vector<32x64xf32>
    %291 = arith.addf %290, %289 : vector<32x64xf32>
    %cst_136 = arith.constant 1.000000e+00 : f32
    %292 = vector.broadcast %cst_136 : f32 to vector<32x64xf32>
    %293 = arith.divf %292, %291 : vector<32x64xf32>
    %cst_137 = arith.constant 1.06140542 : f32
    %294 = vector.broadcast %cst_137 : f32 to vector<32x64xf32>
    %295 = arith.mulf %294, %293 : vector<32x64xf32>
    %cst_138 = arith.constant -1.45315206 : f32
    %296 = vector.broadcast %cst_138 : f32 to vector<32x64xf32>
    %297 = arith.addf %295, %296 : vector<32x64xf32>
    %298 = arith.mulf %297, %293 : vector<32x64xf32>
    %cst_139 = arith.constant 1.42141378 : f32
    %299 = vector.broadcast %cst_139 : f32 to vector<32x64xf32>
    %300 = arith.addf %298, %299 : vector<32x64xf32>
    %301 = arith.mulf %300, %293 : vector<32x64xf32>
    %cst_140 = arith.constant -0.284496725 : f32
    %302 = vector.broadcast %cst_140 : f32 to vector<32x64xf32>
    %303 = arith.addf %301, %302 : vector<32x64xf32>
    %304 = arith.mulf %303, %293 : vector<32x64xf32>
    %cst_141 = arith.constant 0.254829586 : f32
    %305 = vector.broadcast %cst_141 : f32 to vector<32x64xf32>
    %306 = arith.addf %304, %305 : vector<32x64xf32>
    %307 = arith.mulf %306, %293 : vector<32x64xf32>
    %cst_142 = arith.constant 0.000000e+00 : f32
    %308 = vector.broadcast %cst_142 : f32 to vector<32x64xf32>
    %309 = arith.subf %308, %287 : vector<32x64xf32>
    %310 = arith.mulf %309, %287 : vector<32x64xf32>
    %311 = math.exp %310 : vector<32x64xf32>
    %312 = arith.mulf %307, %311 : vector<32x64xf32>
    %cst_143 = arith.constant 1.000000e+00 : f32
    %313 = vector.broadcast %cst_143 : f32 to vector<32x64xf32>
    %314 = arith.subf %313, %312 : vector<32x64xf32>
    %315 = arith.mulf %286, %314 : vector<32x64xf32>
    %cst_144 = arith.constant 1.000000e+00 : f32
    %316 = vector.broadcast %cst_144 : f32 to vector<32x64xf32>
    %317 = arith.addf %316, %315 : vector<32x64xf32>
    %318 = arith.mulf %279, %317 : vector<32x64xf32>
    %cst_145 = arith.constant dense<0.000000e+00> : vector<32x32xf32>
    %319 = tpu.matmul %318, %175, %cst_145 {dimension_numbers = #tpu.dot_dimension_numbers<[1], [0], [0], [1], [0, 0, 1, 1], [], []>} : vector<32x64xf32>, vector<64x32xf32>, vector<32x32xf32> -> vector<32x32xf32>
    %320 = vector.broadcast %176 : vector<1x32xf32> to vector<32x32xf32>
    %321 = arith.addf %319, %320 : vector<32x32xf32>
    %322 = arith.addf %252, %321 : vector<32x32xf32>
    %c0_146 = arith.constant 0 : index
    %c0_147 = arith.constant 0 : index
    %323 = vector.load %arg27[%c0_146, %c0_147] : memref<1x32xf32, #tpu.memory_space<vmem>>, vector<1x32xf32>
    %c0_148 = arith.constant 0 : index
    %c0_149 = arith.constant 0 : index
    %324 = vector.load %arg28[%c0_148, %c0_149] : memref<1x32xf32, #tpu.memory_space<vmem>>, vector<1x32xf32>
    %c0_150 = arith.constant 0 : index
    %c0_151 = arith.constant 0 : index
    %325 = vector.load %arg29[%c0_150, %c0_151] : memref<32x10xf32, #tpu.memory_space<vmem>>, vector<32x10xf32>
    %c0_152 = arith.constant 0 : index
    %c0_153 = arith.constant 0 : index
    %326 = vector.load %arg30[%c0_152, %c0_153] : memref<1x10xf32, #tpu.memory_space<vmem>>, vector<1x10xf32>
    %cst_154 = arith.constant dense<0.000000e+00> : vector<32xf32>
    %327 = vector.multi_reduction <add>, %322, %cst_154 [1] : vector<32x32xf32> to vector<32xf32>
    %328 = vector.shape_cast %327 : vector<32xf32> to vector<32x1xf32>
    %cst_155 = arith.constant 3.200000e+01 : f32
    %329 = vector.broadcast %cst_155 : f32 to vector<32x1xf32>
    %330 = arith.divf %328, %329 : vector<32x1xf32>
    %331 = vector.broadcast %330 : vector<32x1xf32> to vector<32x32xf32>
    %332 = arith.subf %322, %331 : vector<32x32xf32>
    %333 = arith.mulf %332, %332 : vector<32x32xf32>
    %cst_156 = arith.constant dense<0.000000e+00> : vector<32xf32>
    %334 = vector.multi_reduction <add>, %333, %cst_156 [1] : vector<32x32xf32> to vector<32xf32>
    %335 = vector.shape_cast %334 : vector<32xf32> to vector<32x1xf32>
    %cst_157 = arith.constant 3.200000e+01 : f32
    %336 = vector.broadcast %cst_157 : f32 to vector<32x1xf32>
    %337 = arith.divf %335, %336 : vector<32x1xf32>
    %338 = vector.broadcast %330 : vector<32x1xf32> to vector<32x32xf32>
    %339 = arith.subf %322, %338 : vector<32x32xf32>
    %cst_158 = arith.constant 9.99999974E-6 : f32
    %340 = vector.broadcast %cst_158 : f32 to vector<32x1xf32>
    %341 = arith.addf %337, %340 : vector<32x1xf32>
    %342 = math.rsqrt %341 : vector<32x1xf32>
    %343 = vector.broadcast %342 : vector<32x1xf32> to vector<32x32xf32>
    %344 = arith.mulf %339, %343 : vector<32x32xf32>
    %345 = vector.broadcast %323 : vector<1x32xf32> to vector<32x32xf32>
    %346 = arith.mulf %344, %345 : vector<32x32xf32>
    %347 = vector.broadcast %324 : vector<1x32xf32> to vector<32x32xf32>
    %348 = arith.addf %346, %347 : vector<32x32xf32>
    %349 = vector.extract_strided_slice %348 {offsets = [0, 0], sizes = [16, 32], strides = [1, 1]} : vector<32x32xf32> to vector<16x32xf32>
    %cst_159 = arith.constant dense<0.000000e+00> : vector<32xf32>
    %350 = vector.multi_reduction <add>, %349, %cst_159 [0] : vector<16x32xf32> to vector<32xf32>
    %351 = vector.shape_cast %350 : vector<32xf32> to vector<1x32xf32>
    %cst_160 = arith.constant 1.600000e+01 : f32
    %352 = vector.broadcast %cst_160 : f32 to vector<1x32xf32>
    %353 = arith.divf %351, %352 : vector<1x32xf32>
    %354 = vector.extract_strided_slice %348 {offsets = [16, 0], sizes = [16, 32], strides = [1, 1]} : vector<32x32xf32> to vector<16x32xf32>
    %cst_161 = arith.constant dense<0.000000e+00> : vector<32xf32>
    %355 = vector.multi_reduction <add>, %354, %cst_161 [0] : vector<16x32xf32> to vector<32xf32>
    %356 = vector.shape_cast %355 : vector<32xf32> to vector<1x32xf32>
    %cst_162 = arith.constant 1.600000e+01 : f32
    %357 = vector.broadcast %cst_162 : f32 to vector<1x32xf32>
    %358 = arith.divf %356, %357 : vector<1x32xf32>
    %359 = tpu.concatenate %353, %358 in 0 : vector<1x32xf32>, vector<1x32xf32> -> vector<2x32xf32>
    %cst_163 = arith.constant dense<0.000000e+00> : vector<2x10xf32>
    %360 = tpu.matmul %359, %325, %cst_163 {dimension_numbers = #tpu.dot_dimension_numbers<[1], [0], [0], [1], [0, 0, 1, 1], [], []>} : vector<2x32xf32>, vector<32x10xf32>, vector<2x10xf32> -> vector<2x10xf32>
    %361 = vector.broadcast %326 : vector<1x10xf32> to vector<2x10xf32>
    %362 = arith.addf %360, %361 : vector<2x10xf32>
    %cst_164 = arith.constant dense<0xFF800000> : vector<2xf32>
    %363 = vector.multi_reduction <maximumf>, %362, %cst_164 [1] : vector<2x10xf32> to vector<2xf32>
    %364 = vector.shape_cast %363 : vector<2xf32> to vector<2x1xf32>
    %365 = vector.broadcast %364 : vector<2x1xf32> to vector<2x10xf32>
    %366 = arith.subf %362, %365 : vector<2x10xf32>
    %367 = math.exp %366 : vector<2x10xf32>
    %cst_165 = arith.constant dense<0.000000e+00> : vector<2xf32>
    %368 = vector.multi_reduction <add>, %367, %cst_165 [1] : vector<2x10xf32> to vector<2xf32>
    %369 = vector.shape_cast %368 : vector<2xf32> to vector<2x1xf32>
    %370 = vector.broadcast %369 : vector<2x1xf32> to vector<2x10xf32>
    %371 = arith.divf %367, %370 : vector<2x10xf32>
    %c0_166 = arith.constant 0 : index
    %c0_167 = arith.constant 0 : index
    %372 = vector.load %arg31[%c0_166, %c0_167] : memref<2x10xf32, #tpu.memory_space<vmem>>, vector<2x10xf32>
    tpu.vector_store %arg31[%c0_166, %c0_167], %371 {strides = array<i32>} : memref<2x10xf32, #tpu.memory_space<vmem>>, vector<2x10xf32>,
    return
  }
}

</mosaic_0001>

<llo_original>
// kernel: tpu_custom_call.1
$region0: #{tpu_custom_call.1}
  #allocation0 [shape = 'u32[]', space=smem, size = 0x4, offset = 0x4, fixed_abs, tag = 'smem constant byte address 0x4 - core index']
  #allocation1 [shape = 'u32[144,128]{1,0:T(1,128)}', space=vmem, size = 0x12000, scoped, tag = 'internal scratch']
  %s0 = inlined_call_operand.smem [shape: u32[32], index: -1, kind: input, shape index: {}]
  %s1 = sld [smem:[%s0]]
  %s2 = scalar_lea.smem %s0, 1
  %s3 = sld [smem:[%s2]]
  %s4 = scalar_lea.smem %s0, 2
  %s5 = sld [smem:[%s4]]
  %s6 = scalar_lea.smem %s0, 3
  %s7 = sld [smem:[%s6]]
  %s8 = scalar_lea.smem %s0, 4
  %s9 = sld [smem:[%s8]]
  %s10 = scalar_lea.smem %s0, 5
  %s11 = sld [smem:[%s10]]
  %s12 = scalar_lea.smem %s0, 6
  %s13 = sld [smem:[%s12]]
  %s14 = scalar_lea.smem %s0, 7
  %s15 = sld [smem:[%s14]]
  %s16 = scalar_lea.smem %s0, 8
  %s17 = sld [smem:[%s16]]
  %s18 = scalar_lea.smem %s0, 9
  %s19 = sld [smem:[%s18]]
  %s20 = scalar_lea.smem %s0, 10
  %s21 = sld [smem:[%s20]]
  %s22 = scalar_lea.smem %s0, 11
  %s23 = sld [smem:[%s22]]
  %s24 = scalar_lea.smem %s0, 12
  %s25 = sld [smem:[%s24]]
  %s26 = scalar_lea.smem %s0, 13
  %s27 = sld [smem:[%s26]]
  %s28 = scalar_lea.smem %s0, 14
  %s29 = sld [smem:[%s28]]
  %s30 = scalar_lea.smem %s0, 15
  %s31 = sld [smem:[%s30]]
  %s32 = scalar_lea.smem %s0, 16
  %s33 = sld [smem:[%s32]]
  %s34 = scalar_lea.smem %s0, 17
  %s35 = sld [smem:[%s34]]
  %s36 = scalar_lea.smem %s0, 18
  %s37 = sld [smem:[%s36]]
  %s38 = scalar_lea.smem %s0, 19
  %s39 = sld [smem:[%s38]]
  %s40 = scalar_lea.smem %s0, 20
  %s41 = sld [smem:[%s40]]
  %s42 = scalar_lea.smem %s0, 21
  %s43 = sld [smem:[%s42]]
  %s44 = scalar_lea.smem %s0, 22
  %s45 = sld [smem:[%s44]]
  %s46 = scalar_lea.smem %s0, 23
  %s47 = sld [smem:[%s46]]
  %s48 = scalar_lea.smem %s0, 24
  %s49 = sld [smem:[%s48]]
  %s50 = scalar_lea.smem %s0, 25
  %s51 = sld [smem:[%s50]]
  %s52 = scalar_lea.smem %s0, 26
  %s53 = sld [smem:[%s52]]
  %s54 = scalar_lea.smem %s0, 27
  %s55 = sld [smem:[%s54]]
  %s56 = scalar_lea.smem %s0, 28
  %s57 = sld [smem:[%s56]]
  %s58 = scalar_lea.smem %s0, 29
  %s59 = sld [smem:[%s58]]
  %s60 = scalar_lea.smem %s0, 30
  %s61 = sld [smem:[%s60]]
  %s62 = scalar_lea.smem %s0, 31
  %s63 = sld [smem:[%s62]]
  %s64 = sld [smem:[#allocation0]]
  $region134: #{tpu_custom_call.1} parent=0
    _
  %s66 = ssub.s32 1, %s64
  %s67 = scalar_select 0, %s66, %s64
  $region1: #{tpu_custom_call.1} parent=0
    #allocation2 [shape = 'u8[1024]{0}', space=vmem, size = 0x400, scoped, tag = 'output window, operand 0, single buffered']
    #allocation3 [shape = 's32[1]{0}', space=sflag, size = 0x4, scoped, tag = 'scoped memory for tpu_custom_call.1']
    %68 = vsyncpa [#allocation3], 0
    // Predicated region
    $region2: #{tpu_custom_call.1} parent=1 // pred_check
      _
    $region3: #{tpu_custom_call.1} parent=1 // pred_check_branch
      %70 = sbr.rel (0) target = $region5
    $region4: #{tpu_custom_call.1} parent=1 // pred_region
      _
    $region5: #{tpu_custom_call.1} parent=1 // pred_fallthru
      _
    // Predicated region
    $region6: #{tpu_custom_call.1} parent=1 // pred_check
      _
    $region7: #{tpu_custom_call.1} parent=1 // pred_check_branch
      %72 = sbr.rel (0) target = $region9
    $region8: #{tpu_custom_call.1} parent=1 // pred_region
      _
    $region9: #{tpu_custom_call.1} parent=1 // pred_fallthru
      _
    // Predicated region
    $region10: #{tpu_custom_call.1} parent=1 // pred_check
      _
    $region11: #{tpu_custom_call.1} parent=1 // pred_check_branch
      %74 = sbr.rel (0) target = $region13
    $region12: #{tpu_custom_call.1} parent=1 // pred_region
      _
    $region13: #{tpu_custom_call.1} parent=1 // pred_fallthru
      _
    // Predicated region
    $region14: #{tpu_custom_call.1} parent=1 // pred_check
      _
    $region15: #{tpu_custom_call.1} parent=1 // pred_check_branch
      %76 = sbr.rel (0) target = $region17
    $region16: #{tpu_custom_call.1} parent=1 // pred_region
      _
    $region17: #{tpu_custom_call.1} parent=1 // pred_fallthru
      _
    // Predicated region
    $region18: #{tpu_custom_call.1} parent=1 // pred_check
      _
    $region19: #{tpu_custom_call.1} parent=1 // pred_check_branch
      %78 = sbr.rel (0) target = $region21
    $region20: #{tpu_custom_call.1} parent=1 // pred_region
      _
    $region21: #{tpu_custom_call.1} parent=1 // pred_fallthru
      _
    // Predicated region
    $region22: #{tpu_custom_call.1} parent=1 // pred_check
      _
    $region23: #{tpu_custom_call.1} parent=1 // pred_check_branch
      %80 = sbr.rel (0) target = $region25
    $region24: #{tpu_custom_call.1} parent=1 // pred_region
      _
    $region25: #{tpu_custom_call.1} parent=1 // pred_fallthru
      _
    // Predicated region
    $region26: #{tpu_custom_call.1} parent=1 // pred_check
      _
    $region27: #{tpu_custom_call.1} parent=1 // pred_check_branch
      %82 = sbr.rel (0) target = $region29
    $region28: #{tpu_custom_call.1} parent=1 // pred_region
      _
    $region29: #{tpu_custom_call.1} parent=1 // pred_fallthru
      _
    // Predicated region
    $region30: #{tpu_custom_call.1} parent=1 // pred_check
      _
    $region31: #{tpu_custom_call.1} parent=1 // pred_check_branch
      %84 = sbr.rel (0) target = $region33
    $region32: #{tpu_custom_call.1} parent=1 // pred_region
      _
    $region33: #{tpu_custom_call.1} parent=1 // pred_fallthru
      _
    // Predicated region
    $region34: #{tpu_custom_call.1} parent=1 // pred_check
      _
    $region35: #{tpu_custom_call.1} parent=1 // pred_check_branch
      %86 = sbr.rel (0) target = $region37
    $region36: #{tpu_custom_call.1} parent=1 // pred_region
      _
    $region37: #{tpu_custom_call.1} parent=1 // pred_fallthru
      _
    // Predicated region
    $region38: #{tpu_custom_call.1} parent=1 // pred_check
      _
    $region39: #{tpu_custom_call.1} parent=1 // pred_check_branch
      %88 = sbr.rel (0) target = $region41
    $region40: #{tpu_custom_call.1} parent=1 // pred_region
      _
    $region41: #{tpu_custom_call.1} parent=1 // pred_fallthru
      _
    // Predicated region
    $region42: #{tpu_custom_call.1} parent=1 // pred_check
      _
    $region43: #{tpu_custom_call.1} parent=1 // pred_check_branch
      %90 = sbr.rel (0) target = $region45
    $region44: #{tpu_custom_call.1} parent=1 // pred_region
      _
    $region45: #{tpu_custom_call.1} parent=1 // pred_fallthru
      _
    // Predicated region
    $region46: #{tpu_custom_call.1} parent=1 // pred_check
      _
    $region47: #{tpu_custom_call.1} parent=1 // pred_check_branch
      %92 = sbr.rel (0) target = $region49
    $region48: #{tpu_custom_call.1} parent=1 // pred_region
      _
    $region49: #{tpu_custom_call.1} parent=1 // pred_fallthru
      _
    // Predicated region
    $region50: #{tpu_custom_call.1} parent=1 // pred_check
      _
    $region51: #{tpu_custom_call.1} parent=1 // pred_check_branch
      %94 = sbr.rel (0) target = $region53
    $region52: #{tpu_custom_call.1} parent=1 // pred_region
      _
    $region53: #{tpu_custom_call.1} parent=1 // pred_fallthru
      _
    // Predicated region
    $region54: #{tpu_custom_call.1} parent=1 // pred_check
      _
    $region55: #{tpu_custom_call.1} parent=1 // pred_check_branch
      %96 = sbr.rel (0) target = $region57
    $region56: #{tpu_custom_call.1} parent=1 // pred_region
      _
    $region57: #{tpu_custom_call.1} parent=1 // pred_fallthru
      _
    // Predicated region
    $region58: #{tpu_custom_call.1} parent=1 // pred_check
      _
    $region59: #{tpu_custom_call.1} parent=1 // pred_check_branch
      %98 = sbr.rel (0) target = $region61
    $region60: #{tpu_custom_call.1} parent=1 // pred_region
      _
    $region61: #{tpu_custom_call.1} parent=1 // pred_fallthru
      _
    // Predicated region
    $region62: #{tpu_custom_call.1} parent=1 // pred_check
      _
    $region63: #{tpu_custom_call.1} parent=1 // pred_check_branch
      %100 = sbr.rel (0) target = $region65
    $region64: #{tpu_custom_call.1} parent=1 // pred_region
      _
    $region65: #{tpu_custom_call.1} parent=1 // pred_fallthru
      _
    // Predicated region
    $region66: #{tpu_custom_call.1} parent=1 // pred_check
      _
    $region67: #{tpu_custom_call.1} parent=1 // pred_check_branch
      %102 = sbr.rel (0) target = $region69
    $region68: #{tpu_custom_call.1} parent=1 // pred_region
      _
    $region69: #{tpu_custom_call.1} parent=1 // pred_fallthru
      _
    // Predicated region
    $region70: #{tpu_custom_call.1} parent=1 // pred_check
      _
    $region71: #{tpu_custom_call.1} parent=1 // pred_check_branch
      %104 = sbr.rel (0) target = $region73
    $region72: #{tpu_custom_call.1} parent=1 // pred_region
      _
    $region73: #{tpu_custom_call.1} parent=1 // pred_fallthru
      _
    // Predicated region
    $region74: #{tpu_custom_call.1} parent=1 // pred_check
      _
    $region75: #{tpu_custom_call.1} parent=1 // pred_check_branch
      %106 = sbr.rel (0) target = $region77
    $region76: #{tpu_custom_call.1} parent=1 // pred_region
      _
    $region77: #{tpu_custom_call.1} parent=1 // pred_fallthru
      _
    // Predicated region
    $region78: #{tpu_custom_call.1} parent=1 // pred_check
      _
    $region79: #{tpu_custom_call.1} parent=1 // pred_check_branch
      %108 = sbr.rel (0) target = $region81
    $region80: #{tpu_custom_call.1} parent=1 // pred_region
      _
    $region81: #{tpu_custom_call.1} parent=1 // pred_fallthru
      _
    // Predicated region
    $region82: #{tpu_custom_call.1} parent=1 // pred_check
      _
    $region83: #{tpu_custom_call.1} parent=1 // pred_check_branch
      %110 = sbr.rel (0) target = $region85
    $region84: #{tpu_custom_call.1} parent=1 // pred_region
      _
    $region85: #{tpu_custom_call.1} parent=1 // pred_fallthru
      _
    // Predicated region
    $region86: #{tpu_custom_call.1} parent=1 // pred_check
      _
    $region87: #{tpu_custom_call.1} parent=1 // pred_check_branch
      %112 = sbr.rel (0) target = $region89
    $region88: #{tpu_custom_call.1} parent=1 // pred_region
      _
    $region89: #{tpu_custom_call.1} parent=1 // pred_fallthru
      _
    // Predicated region
    $region90: #{tpu_custom_call.1} parent=1 // pred_check
      _
    $region91: #{tpu_custom_call.1} parent=1 // pred_check_branch
      %114 = sbr.rel (0) target = $region93
    $region92: #{tpu_custom_call.1} parent=1 // pred_region
      _
    $region93: #{tpu_custom_call.1} parent=1 // pred_fallthru
      _
    // Predicated region
    $region94: #{tpu_custom_call.1} parent=1 // pred_check
      _
    $region95: #{tpu_custom_call.1} parent=1 // pred_check_branch
      %116 = sbr.rel (0) target = $region97
    $region96: #{tpu_custom_call.1} parent=1 // pred_region
      _
    $region97: #{tpu_custom_call.1} parent=1 // pred_fallthru
      _
    // Predicated region
    $region98: #{tpu_custom_call.1} parent=1 // pred_check
      _
    $region99: #{tpu_custom_call.1} parent=1 // pred_check_branch
      %118 = sbr.rel (0) target = $region101
    $region100: #{tpu_custom_call.1} parent=1 // pred_region
      _
    $region101: #{tpu_custom_call.1} parent=1 // pred_fallthru
      _
    // Predicated region
    $region102: #{tpu_custom_call.1} parent=1 // pred_check
      _
    $region103: #{tpu_custom_call.1} parent=1 // pred_check_branch
      %120 = sbr.rel (0) target = $region105
    $region104: #{tpu_custom_call.1} parent=1 // pred_region
      _
    $region105: #{tpu_custom_call.1} parent=1 // pred_fallthru
      _
    // Predicated region
    $region106: #{tpu_custom_call.1} parent=1 // pred_check
      _
    $region107: #{tpu_custom_call.1} parent=1 // pred_check_branch
      %122 = sbr.rel (0) target = $region109
    $region108: #{tpu_custom_call.1} parent=1 // pred_region
      _
    $region109: #{tpu_custom_call.1} parent=1 // pred_fallthru
      _
    // Predicated region
    $region110: #{tpu_custom_call.1} parent=1 // pred_check
      _
    $region111: #{tpu_custom_call.1} parent=1 // pred_check_branch
      %124 = sbr.rel (0) target = $region113
    $region112: #{tpu_custom_call.1} parent=1 // pred_region
      _
    $region113: #{tpu_custom_call.1} parent=1 // pred_fallthru
      _
    // Predicated region
    $region114: #{tpu_custom_call.1} parent=1 // pred_check
      _
    $region115: #{tpu_custom_call.1} parent=1 // pred_check_branch
      %126 = sbr.rel (0) target = $region117
    $region116: #{tpu_custom_call.1} parent=1 // pred_region
      _
    $region117: #{tpu_custom_call.1} parent=1 // pred_fallthru
      _
    // Predicated region
    $region118: #{tpu_custom_call.1} parent=1 // pred_check
      _
    $region119: #{tpu_custom_call.1} parent=1 // pred_check_branch
      %128 = sbr.rel (0) target = $region121
    $region120: #{tpu_custom_call.1} parent=1 // pred_region
      _
    $region121: #{tpu_custom_call.1} parent=1 // pred_fallthru
      _
    // Predicated region
    $region122: #{tpu_custom_call.1} parent=1 // pred_check
      _
    $region123: #{tpu_custom_call.1} parent=1 // pred_check_branch
      %130 = sbr.rel (0) target = $region125
    $region124: #{tpu_custom_call.1} parent=1 // pred_region
      _
    $region125: #{tpu_custom_call.1} parent=1 // pred_fallthru
      _
    %v131 = vld [vmem:[%s1] sm:$0xff]
    %v132 = vld [vmem:[%s1 + $0x8] sm:$0xff]
    %v133 = vld [vmem:[%s1 + $0x10] sm:$0xff]
    %v134 = vld [vmem:[%s1 + $0x18] sm:$0xff]
    %v135 = vld [vmem:[%s3] sm:$0xff]
    %v136 = vld [vmem:[%s3 + $0x8] sm:$0xff]
    %v137 = vld [vmem:[%s3 + $0x10] sm:$0xff]
    %v138 = vld [vmem:[%s3 + $0x18] sm:$0xff]
    %v139 = vld [vmem:[%s3 + $0x20] sm:$0xff]
    %v140 = vld [vmem:[%s3 + $0x28] sm:$0xff]
    %v141 = vld [vmem:[%s3 + $0x30] sm:$0xff]
    %v142 = vld [vmem:[%s3 + $0x38] sm:$0xff]
    %v143 = vld [vmem:[%s5] sm:$0x1]
    %v145 = vlaneseq
    %v146 = vshrl.u32 %v145, 7
    %v147 = vsub.s32 0, %v146
    %v148 = vrot.slane %v143, %v147
    %vm150 = vcmask 523264
    %v152 = vsel %vm150, %v131, 0
    %v155 = vsel %vm150, %v132, 0
    %v158 = vsel %vm150, %v133, 0
    %v161 = vsel %vm150, %v134, 0
    %163 = vmatprep.subr.mxu0 0.0
    %164 = vmatpush1.msra.mxu0 0.0
    %165 = vmatprep.subr.mxu0 0.0
    %166 = vmatpush1.msra.mxu0 0.0
    %167 = vmatprep.subr.mxu0 0.0
    %168 = vmatpush1.msra.mxu0 0.0
    %169 = vmatprep.subr.mxu0 0.0
    %170 = vmatpush1.msra.mxu0 0.0
    %171 = vmatprep.subr.mxu0 0.0
    %172 = vmatpush1.msra.mxu0 0.0
    %173 = vmatprep.subr.mxu0 0.0
    %174 = vmatpush1.msra.mxu0 0.0
    %175 = vmatprep.subr.mxu0 0.0
    %176 = vmatpush1.msra.mxu0 0.0
    %177 = vmatprep.subr.mxu0 0.0
    %178 = vmatpush1.msra.mxu0 0.0
    %179 = vmatprep.subr.mxu0 0.0
    %180 = vmatpush1.msra.mxu0 %v142
    %181 = vmatprep.subr.mxu0 0.0
    %182 = vmatpush1.msra.mxu0 %v141
    %183 = vmatprep.subr.mxu0 0.0
    %184 = vmatpush1.msra.mxu0 %v140
    %185 = vmatprep.subr.mxu0 0.0
    %186 = vmatpush1.msra.mxu0 %v139
    %187 = vmatprep.subr.mxu0 0.0
    %188 = vmatpush1.msra.mxu0 %v138
    %189 = vmatprep.subr.mxu0 0.0
    %190 = vmatpush1.msra.mxu0 %v137
    %191 = vmatprep.subr.mxu0 0.0
    %192 = vmatpush1.msra.mxu0 %v136
    %193 = vmatprep.subr.mxu0 0.0
    %194 = vmatpush1.msra.mxu0 %v135
    %195 = vmatprep.subr.mxu0 0.0
    %196 = vmatpush2.msra.mxu0 0.0
    %197 = vmatprep.subr.mxu0 0.0
    %198 = vmatpush2.msra.mxu0 0.0
    %199 = vmatprep.subr.mxu0 0.0
    %200 = vmatpush2.msra.mxu0 0.0
    %201 = vmatprep.subr.mxu0 0.0
    %202 = vmatpush2.msra.mxu0 0.0
    %203 = vmatprep.subr.mxu0 0.0
    %204 = vmatpush2.msra.mxu0 0.0
    %205 = vmatprep.subr.mxu0 0.0
    %206 = vmatpush2.msra.mxu0 0.0
    %207 = vmatprep.subr.mxu0 0.0
    %208 = vmatpush2.msra.mxu0 0.0
    %209 = vmatprep.subr.mxu0 0.0
    %210 = vmatpush2.msra.mxu0 0.0
    %211 = vmatprep.subr.mxu0 0.0
    %212 = vmatpush2.msra.mxu0 0.0
    %213 = vmatprep.subr.mxu0 0.0
    %214 = vmatpush2.msra.mxu0 0.0
    %215 = vmatprep.subr.mxu0 0.0
    %216 = vmatpush2.msra.mxu0 0.0
    %217 = vmatprep.subr.mxu0 0.0
    %218 = vmatpush2.msra.mxu0 0.0
    %219 = vmatprep.subr.mxu0 0.0
    %220 = vmatpush2.msra.mxu0 0.0
    %221 = vmatprep.subr.mxu0 0.0
    %222 = vmatpush2.msra.mxu0 0.0
    %223 = vmatprep.subr.mxu0 0.0
    %224 = vmatpush2.msra.mxu0 0.0
    %225 = vmatprep.subr.mxu0 0.0
    %226 = vmatpush2.msra.mxu0 0.0
    %227 = vmatprep.mubr.f32.mxu0 0.0
    %228 = vmatmul.mubr.f32.gmra.mxu0 %v152
    %v229 = vpop.f32.mrf.mxu0
    %v230 = vadd.f32 %v148, %v229
    %v231 = vpop.f32.mrf.mxu0
    %232 = vmatprep.mubr.f32.mxu0 0.0
    %233 = vmatmul.mubr.f32.gmra.mxu0 %v155
    %v234 = vpop.f32.mrf.mxu0
    %v235 = vadd.f32 %v148, %v234
    %v236 = vpop.f32.mrf.mxu0
    %237 = vmatprep.mubr.f32.mxu0 0.0
    %238 = vmatmul.mubr.f32.gmra.mxu0 %v158
    %v239 = vpop.f32.mrf.mxu0
    %v240 = vadd.f32 %v148, %v239
    %v241 = vpop.f32.mrf.mxu0
    %242 = vmatprep.mubr.f32.mxu0 0.0
    %243 = vmatmul.mubr.f32.gmra.mxu0 %v161
    %v244 = vpop.f32.mrf.mxu0
    %v245 = vadd.f32 %v148, %v244
    %v246 = vpop.f32.mrf.mxu0
    %247 = vdwg.mxu0
    %v248 = vld [vmem:[%s7] sm:$0x1]
    %v249 = vld [vmem:[%s9] sm:$0x1]
    %v250 = vld [vmem:[%s11] sm:$0xff]
    %v251 = vld [vmem:[%s11 + $0x8] sm:$0xff]
    %v252 = vld [vmem:[%s13] sm:$0xff]
    %v253 = vld [vmem:[%s13 + $0x8] sm:$0xff]
    %v254 = vld [vmem:[%s15] sm:$0xff]
    %v255 = vld [vmem:[%s15 + $0x8] sm:$0xff]
    %v256 = vld [vmem:[%s17] sm:$0xff]
    %v257 = vld [vmem:[%s17 + $0x8] sm:$0xff]
    %v258 = vld [vmem:[%s19] sm:$0x1]
    %v259 = vld [vmem:[%s21] sm:$0x1]
    %v260 = vld [vmem:[%s23] sm:$0xff]
    %v261 = vld [vmem:[%s23 + $0x8] sm:$0xff]
    %v262 = vld [vmem:[%s23 + $0x10] sm:$0xff]
    %v263 = vld [vmem:[%s23 + $0x18] sm:$0xff]
    %v264 = vld [vmem:[%s25] sm:$0x1]
    %v265 = vld [vmem:[%s27] sm:$0xff]
    %v266 = vld [vmem:[%s27 + $0x8] sm:$0xff]
    %v267 = vld [vmem:[%s27 + $0x10] sm:$0xff]
    %v268 = vld [vmem:[%s27 + $0x18] sm:$0xff]
    %v269 = vld [vmem:[%s27 + $0x20] sm:$0xff]
    %v270 = vld [vmem:[%s27 + $0x28] sm:$0xff]
    %v271 = vld [vmem:[%s27 + $0x30] sm:$0xff]
    %v272 = vld [vmem:[%s27 + $0x38] sm:$0xff]
    %v273 = vld [vmem:[%s29] sm:$0x1]
    %vm274 = vcmask 261120
    %v275 = vsel %vm274, %v230, 0.0
    %276 = vadd.xlane.f32.xlu0 %v275
    %v277 = vpop.xlane.xlu0 %276
    %v278 = vsel %vm274, %v235, 0.0
    %279 = vadd.xlane.f32.xlu0 %v278
    %v280 = vpop.xlane.xlu0 %279
    %v281 = vsel %vm274, %v240, 0.0
    %282 = vadd.xlane.f32.xlu0 %v281
    %v283 = vpop.xlane.xlu0 %282
    %v284 = vsel %vm274, %v245, 0.0
    %285 = vadd.xlane.f32.xlu0 %v284
    %v286 = vpop.xlane.xlu0 %285
    %v287 = vrcp.pop 32.0
    %v288 = vmul.f32 %v277, %v287
    %v289 = vmul.f32 %v280, %v287
    %v290 = vmul.f32 %v283, %v287
    %v291 = vmul.f32 %v286, %v287
    %v292 = vsub.f32 %v230, %v288
    %v293 = vsub.f32 %v235, %v289
    %v294 = vsub.f32 %v240, %v290
    %v295 = vsub.f32 %v245, %v291
    %v296 = vmul.f32 %v292, %v292
    %v297 = vmul.f32 %v293, %v293
    %v298 = vmul.f32 %v294, %v294
    %v299 = vmul.f32 %v295, %v295
    %v300 = vsel %vm274, %v296, 0.0
    %301 = vadd.xlane.f32.xlu0 %v300
    %v302 = vpop.xlane.xlu0 %301
    %v303 = vsel %vm274, %v297, 0.0
    %304 = vadd.xlane.f32.xlu0 %v303
    %v305 = vpop.xlane.xlu0 %304
    %v306 = vsel %vm274, %v298, 0.0
    %307 = vadd.xlane.f32.xlu0 %v306
    %v308 = vpop.xlane.xlu0 %307
    %v309 = vsel %vm274, %v299, 0.0
    %310 = vadd.xlane.f32.xlu0 %v309
    %v311 = vpop.xlane.xlu0 %310
    %v312 = vmul.f32 %v302, %v287
    %v313 = vmul.f32 %v305, %v287
    %v314 = vmul.f32 %v308, %v287
    %v315 = vmul.f32 %v311, %v287
    %v316 = vadd.f32 %v312, 1e-05
    %v317 = vadd.f32 %v313, 1e-05
    %v318 = vadd.f32 %v314, 1e-05
    %v319 = vadd.f32 %v315, 1e-05
    %v320 = vrsqrt.pop %v316
    %v321 = vrsqrt.pop %v317
    %v322 = vrsqrt.pop %v318
    %v323 = vrsqrt.pop %v319
    %v324 = vmul.f32 %v292, %v320
    %v325 = vmul.f32 %v293, %v321
    %v326 = vmul.f32 %v294, %v322
    %v327 = vmul.f32 %v295, %v323
    %v329 = vlaneseq
    %v330 = vshrl.u32 %v329, 7
    %v331 = vsub.s32 0, %v330
    %v332 = vrot.slane %v248, %v331
    %v334 = vmul.f32 %v324, %v332
    %v335 = vmul.f32 %v325, %v332
    %v336 = vmul.f32 %v326, %v332
    %v337 = vmul.f32 %v327, %v332
    %v339 = vlaneseq
    %v340 = vshrl.u32 %v339, 7
    %v341 = vsub.s32 0, %v340
    %v342 = vrot.slane %v249, %v341
    %v344 = vadd.f32 %v334, %v342
    %v345 = vadd.f32 %v335, %v342
    %v346 = vadd.f32 %v336, %v342
    %v347 = vadd.f32 %v337, %v342
    %350 = vrot.lane.b32.xlu0 %v346, 32
    %v351 = vpop.permute.xlu0 %350
    %352 = vrot.lane.b32.xlu0 %v347, 32
    %v353 = vpop.permute.xlu0 %352
    %v356 = vsel %vm274, %v344, %v351
    %v357 = vsel %vm274, %v345, %v353
    %359 = vset.pattern.permute.xlu0 0
    %360 = vperm.xlu0 %359, %v252
    %v361 = vpop.permute.xlu0 %360
    %364 = vset.pattern.permute.xlu0 0
    %365 = vperm.xlu0 %364, %v253
    %v366 = vpop.permute.xlu0 %365
    %vm368 = vcmask 130048
    %v370 = vsel %vm368, %v250, 0
    %v373 = vsel %vm368, %v251, 0
    %375 = vmatprep.subr.mxu0 0.0
    %376 = vmatpush1.msra.mxu0 0.0
    %377 = vmatprep.subr.mxu0 0.0
    %378 = vmatpush1.msra.mxu0 0.0
    %379 = vmatprep.subr.mxu0 0.0
    %380 = vmatpush1.msra.mxu0 0.0
    %381 = vmatprep.subr.mxu0 0.0
    %382 = vmatpush1.msra.mxu0 0.0
    %383 = vmatprep.subr.mxu0 0.0
    %384 = vmatpush1.msra.mxu0 0.0
    %385 = vmatprep.subr.mxu0 0.0
    %386 = vmatpush1.msra.mxu0 0.0
    %387 = vmatprep.subr.mxu0 0.0
    %388 = vmatpush1.msra.mxu0 0.0
    %389 = vmatprep.subr.mxu0 0.0
    %390 = vmatpush1.msra.mxu0 0.0
    %391 = vmatprep.subr.mxu0 0.0
    %392 = vmatpush1.msra.mxu0 0.0
    %393 = vmatprep.subr.mxu0 0.0
    %394 = vmatpush1.msra.mxu0 0.0
    %395 = vmatprep.subr.mxu0 0.0
    %396 = vmatpush1.msra.mxu0 0.0
    %397 = vmatprep.subr.mxu0 0.0
    %398 = vmatpush1.msra.mxu0 0.0
    %399 = vmatprep.subr.mxu0 0.0
    %400 = vmatpush1.msra.mxu0 0.0
    %401 = vmatprep.subr.mxu0 0.0
    %402 = vmatpush1.msra.mxu0 0.0
    %403 = vmatprep.subr.mxu0 0.0
    %404 = vmatpush1.msra.mxu0 %v357
    %405 = vmatprep.subr.mxu0 0.0
    %406 = vmatpush1.msra.mxu0 %v356
    %407 = vmatprep.subr.mxu0 0.0
    %408 = vmatpush2.msra.mxu0 0.0
    %409 = vmatprep.subr.mxu0 0.0
    %410 = vmatpush2.msra.mxu0 0.0
    %411 = vmatprep.subr.mxu0 0.0
    %412 = vmatpush2.msra.mxu0 0.0
    %413 = vmatprep.subr.mxu0 0.0
    %414 = vmatpush2.msra.mxu0 0.0
    %415 = vmatprep.subr.mxu0 0.0
    %416 = vmatpush2.msra.mxu0 0.0
    %417 = vmatprep.subr.mxu0 0.0
    %418 = vmatpush2.msra.mxu0 0.0
    %419 = vmatprep.subr.mxu0 0.0
    %420 = vmatpush2.msra.mxu0 0.0
    %421 = vmatprep.subr.mxu0 0.0
    %422 = vmatpush2.msra.mxu0 0.0
    %423 = vmatprep.subr.mxu0 0.0
    %424 = vmatpush2.msra.mxu0 0.0
    %425 = vmatprep.subr.mxu0 0.0
    %426 = vmatpush2.msra.mxu0 0.0
    %427 = vmatprep.subr.mxu0 0.0
    %428 = vmatpush2.msra.mxu0 0.0
    %429 = vmatprep.subr.mxu0 0.0
    %430 = vmatpush2.msra.mxu0 0.0
    %431 = vmatprep.subr.mxu0 0.0
    %432 = vmatpush2.msra.mxu0 0.0
    %433 = vmatprep.subr.mxu0 0.0
    %434 = vmatpush2.msra.mxu0 0.0
    %435 = vmatprep.subr.mxu0 0.0
    %436 = vmatpush2.msra.mxu0 0.0
    %437 = vmatprep.subr.mxu0 0.0
    %438 = vmatpush2.msra.mxu0 0.0
    %439 = vmatprep.mubr.f32.mxu0 0.0
    %440 = vmatmul.mubr.f32.gmra.mxu0 %v370
    %v441 = vpop.f32.mrf.mxu0
    %v442 = vadd.f32 %v361, %v441
    %v443 = vpop.f32.mrf.mxu0
    %444 = vmatprep.mubr.f32.mxu0 0.0
    %445 = vmatmul.mubr.f32.gmra.mxu0 %v373
    %v446 = vpop.f32.mrf.mxu0
    %v447 = vadd.f32 %v366, %v446
    %v448 = vpop.f32.mrf.mxu0
    %449 = vdwg.mxu0
    %v450 = vmul.f32 %v442, 0.5
    %v451 = vmul.f32 %v447, 0.5
    %v452 = vmul.f32 %v442, 0.70710677
    %v453 = vmul.f32 %v447, 0.70710677
    %vm454 = vcmp.ge.f32.partialorder %v452, 0.0
    %vm455 = vcmp.ge.f32.partialorder %v453, 0.0
    %v456 = vsel %vm454, 1.0, -1.0
    %v457 = vsel %vm455, 1.0, -1.0
    %v458 = vand.u32 2147483647, %v452
    %v459 = vand.u32 2147483647, %v453
    %v460 = vmul.f32 %v458, 0.3275911
    %v461 = vmul.f32 %v459, 0.3275911
    %v462 = vadd.f32 %v460, 1.0
    %v463 = vadd.f32 %v461, 1.0
    %v464 = vrcp.pop %v462
    %v465 = vmul.f32 1.0, %v464
    %v466 = vrcp.pop %v463
    %v467 = vmul.f32 1.0, %v466
    %v468 = vmul.f32 %v465, 1.0614054
    %v469 = vmul.f32 %v467, 1.0614054
    %v470 = vadd.f32 %v468, -1.4531521
    %v471 = vadd.f32 %v469, -1.4531521
    %v472 = vmul.f32 %v470, %v465
    %v473 = vmul.f32 %v471, %v467
    %v474 = vadd.f32 %v472, 1.4214138
    %v475 = vadd.f32 %v473, 1.4214138
    %v476 = vmul.f32 %v474, %v465
    %v477 = vmul.f32 %v475, %v467
    %v478 = vadd.f32 %v476, -0.28449672
    %v479 = vadd.f32 %v477, -0.28449672
    %v480 = vmul.f32 %v478, %v465
    %v481 = vmul.f32 %v479, %v467
    %v482 = vadd.f32 %v480, 0.2548296
    %v483 = vadd.f32 %v481, 0.2548296
    %v484 = vmul.f32 %v482, %v465
    %v485 = vmul.f32 %v483, %v467
    %v486 = vsub.f32 0.0, %v458
    %v487 = vsub.f32 0.0, %v459
    %v488 = vmul.f32 %v486, %v458
    %v489 = vmul.f32 %v487, %v459
    %v490 = vmul.f32 %v488, 1.442695
    %v491 = vpow.pop %v490
    %v492 = vmul.f32 %v489, 1.442695
    %v493 = vpow.pop %v492
    %v494 = vmul.f32 %v484, %v491
    %v495 = vmul.f32 %v485, %v493
    %v496 = vsub.f32 1.0, %v494
    %v497 = vsub.f32 1.0, %v495
    %v498 = vmul.f32 %v456, %v496
    %v499 = vmul.f32 %v457, %v497
    %v500 = vadd.f32 %v498, 1.0
    %v501 = vadd.f32 %v499, 1.0
    %v502 = vmul.f32 %v450, %v500
    %v503 = vmul.f32 %v451, %v501
    %505 = vset.pattern.permute.xlu0 0
    %506 = vperm.xlu0 %505, %v256
    %v507 = vpop.permute.xlu0 %506
    %510 = vset.pattern.permute.xlu0 0
    %511 = vperm.xlu0 %510, %v257
    %v512 = vpop.permute.xlu0 %511
    %v515 = vsel %vm368, %v254, 0
    %v518 = vsel %vm368, %v255, 0
    %520 = vmatprep.subr.mxu0 0.0
    %521 = vmatpush1.msra.mxu0 0.0
    %522 = vmatprep.subr.mxu0 0.0
    %523 = vmatpush1.msra.mxu0 0.0
    %524 = vmatprep.subr.mxu0 0.0
    %525 = vmatpush1.msra.mxu0 0.0
    %526 = vmatprep.subr.mxu0 0.0
    %527 = vmatpush1.msra.mxu0 0.0
    %528 = vmatprep.subr.mxu0 0.0
    %529 = vmatpush1.msra.mxu0 0.0
    %530 = vmatprep.subr.mxu0 0.0
    %531 = vmatpush1.msra.mxu0 0.0
    %532 = vmatprep.subr.mxu0 0.0
    %533 = vmatpush1.msra.mxu0 0.0
    %534 = vmatprep.subr.mxu0 0.0
    %535 = vmatpush1.msra.mxu0 0.0
    %536 = vmatprep.subr.mxu0 0.0
    %537 = vmatpush1.msra.mxu0 0.0
    %538 = vmatprep.subr.mxu0 0.0
    %539 = vmatpush1.msra.mxu0 0.0
    %540 = vmatprep.subr.mxu0 0.0
    %541 = vmatpush1.msra.mxu0 0.0
    %542 = vmatprep.subr.mxu0 0.0
    %543 = vmatpush1.msra.mxu0 0.0
    %544 = vmatprep.subr.mxu0 0.0
    %545 = vmatpush1.msra.mxu0 0.0
    %546 = vmatprep.subr.mxu0 0.0
    %547 = vmatpush1.msra.mxu0 0.0
    %548 = vmatprep.subr.mxu0 0.0
    %549 = vmatpush1.msra.mxu0 %v503
    %550 = vmatprep.subr.mxu0 0.0
    %551 = vmatpush1.msra.mxu0 %v502
    %552 = vmatprep.subr.mxu0 0.0
    %553 = vmatpush2.msra.mxu0 0.0
    %554 = vmatprep.subr.mxu0 0.0
    %555 = vmatpush2.msra.mxu0 0.0
    %556 = vmatprep.subr.mxu0 0.0
    %557 = vmatpush2.msra.mxu0 0.0
    %558 = vmatprep.subr.mxu0 0.0
    %559 = vmatpush2.msra.mxu0 0.0
    %560 = vmatprep.subr.mxu0 0.0
    %561 = vmatpush2.msra.mxu0 0.0
    %562 = vmatprep.subr.mxu0 0.0
    %563 = vmatpush2.msra.mxu0 0.0
    %564 = vmatprep.subr.mxu0 0.0
    %565 = vmatpush2.msra.mxu0 0.0
    %566 = vmatprep.subr.mxu0 0.0
    %567 = vmatpush2.msra.mxu0 0.0
    %568 = vmatprep.subr.mxu0 0.0
    %569 = vmatpush2.msra.mxu0 0.0
    %570 = vmatprep.subr.mxu0 0.0
    %571 = vmatpush2.msra.mxu0 0.0
    %572 = vmatprep.subr.mxu0 0.0
    %573 = vmatpush2.msra.mxu0 0.0
    %574 = vmatprep.subr.mxu0 0.0
    %575 = vmatpush2.msra.mxu0 0.0
    %576 = vmatprep.subr.mxu0 0.0
    %577 = vmatpush2.msra.mxu0 0.0
    %578 = vmatprep.subr.mxu0 0.0
    %579 = vmatpush2.msra.mxu0 0.0
    %580 = vmatprep.subr.mxu0 0.0
    %581 = vmatpush2.msra.mxu0 0.0
    %582 = vmatprep.subr.mxu0 0.0
    %583 = vmatpush2.msra.mxu0 0.0
    %584 = vmatprep.mubr.f32.mxu0 0.0
    %585 = vmatmul.mubr.f32.gmra.mxu0 %v515
    %v586 = vpop.f32.mrf.mxu0
    %v587 = vadd.f32 %v507, %v586
    %v588 = vpop.f32.mrf.mxu0
    %589 = vmatprep.mubr.f32.mxu0 0.0
    %590 = vmatmul.mubr.f32.gmra.mxu0 %v518
    %v591 = vpop.f32.mrf.mxu0
    %v592 = vadd.f32 %v512, %v591
    %v593 = vpop.f32.mrf.mxu0
    %594 = vdwg.mxu0
    %597 = vrot.lane.b32.xlu0 %v587, 96
    %v598 = vpop.permute.xlu0 %597
    %599 = vrot.lane.b32.xlu0 %v592, 96
    %v600 = vpop.permute.xlu0 %599
    %v603 = vadd.f32 %v230, %v587
    %v604 = vadd.f32 %v235, %v592
    %v605 = vadd.f32 %v240, %v598
    %v606 = vadd.f32 %v245, %v600
    %v607 = vsel %vm274, %v603, 0.0
    %608 = vadd.xlane.f32.xlu0 %v607
    %v609 = vpop.xlane.xlu0 %608
    %v610 = vsel %vm274, %v604, 0.0
    %611 = vadd.xlane.f32.xlu0 %v610
    %v612 = vpop.xlane.xlu0 %611
    %v613 = vsel %vm274, %v605, 0.0
    %614 = vadd.xlane.f32.xlu0 %v613
    %v615 = vpop.xlane.xlu0 %614
    %v616 = vsel %vm274, %v606, 0.0
    %617 = vadd.xlane.f32.xlu0 %v616
    %v618 = vpop.xlane.xlu0 %617
    %v619 = vmul.f32 %v609, %v287
    %v620 = vmul.f32 %v612, %v287
    %v621 = vmul.f32 %v615, %v287
    %v622 = vmul.f32 %v618, %v287
    %v623 = vsub.f32 %v603, %v619
    %v624 = vsub.f32 %v604, %v620
    %v625 = vsub.f32 %v605, %v621
    %v626 = vsub.f32 %v606, %v622
    %v627 = vmul.f32 %v623, %v623
    %v628 = vmul.f32 %v624, %v624
    %v629 = vmul.f32 %v625, %v625
    %v630 = vmul.f32 %v626, %v626
    %v631 = vsel %vm274, %v627, 0.0
    %632 = vadd.xlane.f32.xlu0 %v631
    %v633 = vpop.xlane.xlu0 %632
    %v634 = vsel %vm274, %v628, 0.0
    %635 = vadd.xlane.f32.xlu0 %v634
    %v636 = vpop.xlane.xlu0 %635
    %v637 = vsel %vm274, %v629, 0.0
    %638 = vadd.xlane.f32.xlu0 %v637
    %v639 = vpop.xlane.xlu0 %638
    %v640 = vsel %vm274, %v630, 0.0
    %641 = vadd.xlane.f32.xlu0 %v640
    %v642 = vpop.xlane.xlu0 %641
    %v643 = vmul.f32 %v633, %v287
    %v644 = vmul.f32 %v636, %v287
    %v645 = vmul.f32 %v639, %v287
    %v646 = vmul.f32 %v642, %v287
    %v647 = vadd.f32 %v643, 1e-05
    %v648 = vadd.f32 %v644, 1e-05
    %v649 = vadd.f32 %v645, 1e-05
    %v650 = vadd.f32 %v646, 1e-05
    %v651 = vrsqrt.pop %v647
    %v652 = vrsqrt.pop %v648
    %v653 = vrsqrt.pop %v649
    %v654 = vrsqrt.pop %v650
    %v655 = vmul.f32 %v623, %v651
    %v656 = vmul.f32 %v624, %v652
    %v657 = vmul.f32 %v625, %v653
    %v658 = vmul.f32 %v626, %v654
    %v660 = vlaneseq
    %v661 = vshrl.u32 %v660, 7
    %v662 = vsub.s32 0, %v661
    %v663 = vrot.slane %v258, %v662
    %v665 = vmul.f32 %v655, %v663
    %v666 = vmul.f32 %v656, %v663
    %v667 = vmul.f32 %v657, %v663
    %v668 = vmul.f32 %v658, %v663
    %v670 = vlaneseq
    %v671 = vshrl.u32 %v670, 7
    %v672 = vsub.s32 0, %v671
    %v673 = vrot.slane %v259, %v672
    %v675 = vadd.f32 %v665, %v673
    %v676 = vadd.f32 %v666, %v673
    %v677 = vadd.f32 %v667, %v673
    %v678 = vadd.f32 %v668, %v673
    %v680 = vlaneseq
    %v681 = vshrl.u32 %v680, 7
    %v682 = vsub.s32 0, %v681
    %v683 = vrot.slane %v264, %v682
    %v686 = vsel %vm274, %v675, 0
    %v689 = vsel %vm274, %v676, 0
    %v692 = vsel %vm274, %v677, 0
    %v695 = vsel %vm274, %v678, 0
    %697 = vmatprep.subr.mxu0 0.0
    %698 = vmatpush1.msra.mxu0 0.0
    %699 = vmatprep.subr.mxu0 0.0
    %700 = vmatpush1.msra.mxu0 0.0
    %701 = vmatprep.subr.mxu0 0.0
    %702 = vmatpush1.msra.mxu0 0.0
    %703 = vmatprep.subr.mxu0 0.0
    %704 = vmatpush1.msra.mxu0 0.0
    %705 = vmatprep.subr.mxu0 0.0
    %706 = vmatpush1.msra.mxu0 0.0
    %707 = vmatprep.subr.mxu0 0.0
    %708 = vmatpush1.msra.mxu0 0.0
    %709 = vmatprep.subr.mxu0 0.0
    %710 = vmatpush1.msra.mxu0 0.0
    %711 = vmatprep.subr.mxu0 0.0
    %712 = vmatpush1.msra.mxu0 0.0
    %713 = vmatprep.subr.mxu0 0.0
    %714 = vmatpush1.msra.mxu0 0.0
    %715 = vmatprep.subr.mxu0 0.0
    %716 = vmatpush1.msra.mxu0 0.0
    %717 = vmatprep.subr.mxu0 0.0
    %718 = vmatpush1.msra.mxu0 0.0
    %719 = vmatprep.subr.mxu0 0.0
    %720 = vmatpush1.msra.mxu0 0.0
    %721 = vmatprep.subr.mxu0 0.0
    %722 = vmatpush1.msra.mxu0 %v263
    %723 = vmatprep.subr.mxu0 0.0
    %724 = vmatpush1.msra.mxu0 %v262
    %725 = vmatprep.subr.mxu0 0.0
    %726 = vmatpush1.msra.mxu0 %v261
    %727 = vmatprep.subr.mxu0 0.0
    %728 = vmatpush1.msra.mxu0 %v260
    %729 = vmatprep.subr.mxu0 0.0
    %730 = vmatpush2.msra.mxu0 0.0
    %731 = vmatprep.subr.mxu0 0.0
    %732 = vmatpush2.msra.mxu0 0.0
    %733 = vmatprep.subr.mxu0 0.0
    %734 = vmatpush2.msra.mxu0 0.0
    %735 = vmatprep.subr.mxu0 0.0
    %736 = vmatpush2.msra.mxu0 0.0
    %737 = vmatprep.subr.mxu0 0.0
    %738 = vmatpush2.msra.mxu0 0.0
    %739 = vmatprep.subr.mxu0 0.0
    %740 = vmatpush2.msra.mxu0 0.0
    %741 = vmatprep.subr.mxu0 0.0
    %742 = vmatpush2.msra.mxu0 0.0
    %743 = vmatprep.subr.mxu0 0.0
    %744 = vmatpush2.msra.mxu0 0.0
    %745 = vmatprep.subr.mxu0 0.0
    %746 = vmatpush2.msra.mxu0 0.0
    %747 = vmatprep.subr.mxu0 0.0
    %748 = vmatpush2.msra.mxu0 0.0
    %749 = vmatprep.subr.mxu0 0.0
    %750 = vmatpush2.msra.mxu0 0.0
    %751 = vmatprep.subr.mxu0 0.0
    %752 = vmatpush2.msra.mxu0 0.0
    %753 = vmatprep.subr.mxu0 0.0
    %754 = vmatpush2.msra.mxu0 0.0
    %755 = vmatprep.subr.mxu0 0.0
    %756 = vmatpush2.msra.mxu0 0.0
    %757 = vmatprep.subr.mxu0 0.0
    %758 = vmatpush2.msra.mxu0 0.0
    %759 = vmatprep.subr.mxu0 0.0
    %760 = vmatpush2.msra.mxu0 0.0
    %761 = vmatprep.mubr.f32.mxu0 0.0
    %762 = vmatmul.mubr.f32.gmra.mxu0 %v686
    %v763 = vpop.f32.mrf.mxu0
    %v764 = vadd.f32 %v683, %v763
    %v765 = vpop.f32.mrf.mxu0
    %766 = vmatprep.mubr.f32.mxu0 0.0
    %767 = vmatmul.mubr.f32.gmra.mxu0 %v689
    %v768 = vpop.f32.mrf.mxu0
    %v769 = vadd.f32 %v683, %v768
    %v770 = vpop.f32.mrf.mxu0
    %771 = vmatprep.mubr.f32.mxu0 0.0
    %772 = vmatmul.mubr.f32.gmra.mxu0 %v692
    %v773 = vpop.f32.mrf.mxu0
    %v774 = vadd.f32 %v683, %v773
    %v775 = vpop.f32.mrf.mxu0
    %776 = vmatprep.mubr.f32.mxu0 0.0
    %777 = vmatmul.mubr.f32.gmra.mxu0 %v695
    %v778 = vpop.f32.mrf.mxu0
    %v779 = vadd.f32 %v683, %v778
    %v780 = vpop.f32.mrf.mxu0
    %781 = vdwg.mxu0
    %v782 = vmul.f32 %v764, 0.5
    %v783 = vmul.f32 %v769, 0.5
    %v784 = vmul.f32 %v774, 0.5
    %v785 = vmul.f32 %v779, 0.5
    %v786 = vmul.f32 %v764, 0.70710677
    %v787 = vmul.f32 %v769, 0.70710677
    %v788 = vmul.f32 %v774, 0.70710677
    %v789 = vmul.f32 %v779, 0.70710677
    %vm790 = vcmp.ge.f32.partialorder %v786, 0.0
    %vm791 = vcmp.ge.f32.partialorder %v787, 0.0
    %vm792 = vcmp.ge.f32.partialorder %v788, 0.0
    %vm793 = vcmp.ge.f32.partialorder %v789, 0.0
    %v794 = vsel %vm790, 1.0, -1.0
    %v795 = vsel %vm791, 1.0, -1.0
    %v796 = vsel %vm792, 1.0, -1.0
    %v797 = vsel %vm793, 1.0, -1.0
    %v798 = vand.u32 2147483647, %v786
    %v799 = vand.u32 2147483647, %v787
    %v800 = vand.u32 2147483647, %v788
    %v801 = vand.u32 2147483647, %v789
    %v802 = vmul.f32 %v798, 0.3275911
    %v803 = vmul.f32 %v799, 0.3275911
    %v804 = vmul.f32 %v800, 0.3275911
    %v805 = vmul.f32 %v801, 0.3275911
    %v806 = vadd.f32 %v802, 1.0
    %v807 = vadd.f32 %v803, 1.0
    %v808 = vadd.f32 %v804, 1.0
    %v809 = vadd.f32 %v805, 1.0
    %v810 = vrcp.pop %v806
    %v811 = vmul.f32 1.0, %v810
    %v812 = vrcp.pop %v807
    %v813 = vmul.f32 1.0, %v812
    %v814 = vrcp.pop %v808
    %v815 = vmul.f32 1.0, %v814
    %v816 = vrcp.pop %v809
    %v817 = vmul.f32 1.0, %v816
    %v818 = vmul.f32 %v811, 1.0614054
    %v819 = vmul.f32 %v813, 1.0614054
    %v820 = vmul.f32 %v815, 1.0614054
    %v821 = vmul.f32 %v817, 1.0614054
    %v822 = vadd.f32 %v818, -1.4531521
    %v823 = vadd.f32 %v819, -1.4531521
    %v824 = vadd.f32 %v820, -1.4531521
    %v825 = vadd.f32 %v821, -1.4531521
    %v826 = vmul.f32 %v822, %v811
    %v827 = vmul.f32 %v823, %v813
    %v828 = vmul.f32 %v824, %v815
    %v829 = vmul.f32 %v825, %v817
    %v830 = vadd.f32 %v826, 1.4214138
    %v831 = vadd.f32 %v827, 1.4214138
    %v832 = vadd.f32 %v828, 1.4214138
    %v833 = vadd.f32 %v829, 1.4214138
    %v834 = vmul.f32 %v830, %v811
    %v835 = vmul.f32 %v831, %v813
    %v836 = vmul.f32 %v832, %v815
    %v837 = vmul.f32 %v833, %v817
    %v838 = vadd.f32 %v834, -0.28449672
    %v839 = vadd.f32 %v835, -0.28449672
    %v840 = vadd.f32 %v836, -0.28449672
    %v841 = vadd.f32 %v837, -0.28449672
    %v842 = vmul.f32 %v838, %v811
    %v843 = vmul.f32 %v839, %v813
    %v844 = vmul.f32 %v840, %v815
    %v845 = vmul.f32 %v841, %v817
    %v846 = vadd.f32 %v842, 0.2548296
    %v847 = vadd.f32 %v843, 0.2548296
    %v848 = vadd.f32 %v844, 0.2548296
    %v849 = vadd.f32 %v845, 0.2548296
    %v850 = vmul.f32 %v846, %v811
    %v851 = vmul.f32 %v847, %v813
    %v852 = vmul.f32 %v848, %v815
    %v853 = vmul.f32 %v849, %v817
    %v854 = vsub.f32 0.0, %v798
    %v855 = vsub.f32 0.0, %v799
    %v856 = vsub.f32 0.0, %v800
    %v857 = vsub.f32 0.0, %v801
    %v858 = vmul.f32 %v854, %v798
    %v859 = vmul.f32 %v855, %v799
    %v860 = vmul.f32 %v856, %v800
    %v861 = vmul.f32 %v857, %v801
    %v862 = vmul.f32 %v858, 1.442695
    %v863 = vpow.pop %v862
    %v864 = vmul.f32 %v859, 1.442695
    %v865 = vpow.pop %v864
    %v866 = vmul.f32 %v860, 1.442695
    %v867 = vpow.pop %v866
    %v868 = vmul.f32 %v861, 1.442695
    %v869 = vpow.pop %v868
    %v870 = vmul.f32 %v850, %v863
    %v871 = vmul.f32 %v851, %v865
    %v872 = vmul.f32 %v852, %v867
    %v873 = vmul.f32 %v853, %v869
    %v874 = vsub.f32 1.0, %v870
    %v875 = vsub.f32 1.0, %v871
    %v876 = vsub.f32 1.0, %v872
    %v877 = vsub.f32 1.0, %v873
    %v878 = vmul.f32 %v794, %v874
    %v879 = vmul.f32 %v795, %v875
    %v880 = vmul.f32 %v796, %v876
    %v881 = vmul.f32 %v797, %v877
    %v882 = vadd.f32 %v878, 1.0
    %v883 = vadd.f32 %v879, 1.0
    %v884 = vadd.f32 %v880, 1.0
    %v885 = vadd.f32 %v881, 1.0
    %v886 = vmul.f32 %v782, %v882
    %v887 = vmul.f32 %v783, %v883
    %v888 = vmul.f32 %v784, %v884
    %v889 = vmul.f32 %v785, %v885
    %v891 = vlaneseq
    %v892 = vshrl.u32 %v891, 7
    %v893 = vsub.s32 0, %v892
    %v894 = vrot.slane %v273, %v893
    %v897 = vsel %vm150, %v886, 0
    %v900 = vsel %vm150, %v887, 0
    %v903 = vsel %vm150, %v888, 0
    %v906 = vsel %vm150, %v889, 0
    %908 = vmatprep.subr.mxu0 0.0
    %909 = vmatpush1.msra.mxu0 0.0
    %910 = vmatprep.subr.mxu0 0.0
    %911 = vmatpush1.msra.mxu0 0.0
    %912 = vmatprep.subr.mxu0 0.0
    %913 = vmatpush1.msra.mxu0 0.0
    %914 = vmatprep.subr.mxu0 0.0
    %915 = vmatpush1.msra.mxu0 0.0
    %916 = vmatprep.subr.mxu0 0.0
    %917 = vmatpush1.msra.mxu0 0.0
    %918 = vmatprep.subr.mxu0 0.0
    %919 = vmatpush1.msra.mxu0 0.0
    %920 = vmatprep.subr.mxu0 0.0
    %921 = vmatpush1.msra.mxu0 0.0
    %922 = vmatprep.subr.mxu0 0.0
    %923 = vmatpush1.msra.mxu0 0.0
    %924 = vmatprep.subr.mxu0 0.0
    %925 = vmatpush1.msra.mxu0 %v272
    %926 = vmatprep.subr.mxu0 0.0
    %927 = vmatpush1.msra.mxu0 %v271
    %928 = vmatprep.subr.mxu0 0.0
    %929 = vmatpush1.msra.mxu0 %v270
    %930 = vmatprep.subr.mxu0 0.0
    %931 = vmatpush1.msra.mxu0 %v269
    %932 = vmatprep.subr.mxu0 0.0
    %933 = vmatpush1.msra.mxu0 %v268
    %934 = vmatprep.subr.mxu0 0.0
    %935 = vmatpush1.msra.mxu0 %v267
    %936 = vmatprep.subr.mxu0 0.0
    %937 = vmatpush1.msra.mxu0 %v266
    %938 = vmatprep.subr.mxu0 0.0
    %939 = vmatpush1.msra.mxu0 %v265
    %940 = vmatprep.subr.mxu0 0.0
    %941 = vmatpush2.msra.mxu0 0.0
    %942 = vmatprep.subr.mxu0 0.0
    %943 = vmatpush2.msra.mxu0 0.0
    %944 = vmatprep.subr.mxu0 0.0
    %945 = vmatpush2.msra.mxu0 0.0
    %946 = vmatprep.subr.mxu0 0.0
    %947 = vmatpush2.msra.mxu0 0.0
    %948 = vmatprep.subr.mxu0 0.0
    %949 = vmatpush2.msra.mxu0 0.0
    %950 = vmatprep.subr.mxu0 0.0
    %951 = vmatpush2.msra.mxu0 0.0
    %952 = vmatprep.subr.mxu0 0.0
    %953 = vmatpush2.msra.mxu0 0.0
    %954 = vmatprep.subr.mxu0 0.0
    %955 = vmatpush2.msra.mxu0 0.0
    %956 = vmatprep.subr.mxu0 0.0
    %957 = vmatpush2.msra.mxu0 0.0
    %958 = vmatprep.subr.mxu0 0.0
    %959 = vmatpush2.msra.mxu0 0.0
    %960 = vmatprep.subr.mxu0 0.0
    %961 = vmatpush2.msra.mxu0 0.0
    %962 = vmatprep.subr.mxu0 0.0
    %963 = vmatpush2.msra.mxu0 0.0
    %964 = vmatprep.subr.mxu0 0.0
    %965 = vmatpush2.msra.mxu0 0.0
    %966 = vmatprep.subr.mxu0 0.0
    %967 = vmatpush2.msra.mxu0 0.0
    %968 = vmatprep.subr.mxu0 0.0
    %969 = vmatpush2.msra.mxu0 0.0
    %970 = vmatprep.subr.mxu0 0.0
    %971 = vmatpush2.msra.mxu0 0.0
    %972 = vmatprep.mubr.f32.mxu0 0.0
    %973 = vmatmul.mubr.f32.gmra.mxu0 %v897
    %v974 = vpop.f32.mrf.mxu0
    %v975 = vadd.f32 %v894, %v974
    %v976 = vpop.f32.mrf.mxu0
    %977 = vmatprep.mubr.f32.mxu0 0.0
    %978 = vmatmul.mubr.f32.gmra.mxu0 %v900
    %v979 = vpop.f32.mrf.mxu0
    %v980 = vadd.f32 %v894, %v979
    %v981 = vpop.f32.mrf.mxu0
    %982 = vmatprep.mubr.f32.mxu0 0.0
    %983 = vmatmul.mubr.f32.gmra.mxu0 %v903
    %v984 = vpop.f32.mrf.mxu0
    %v985 = vadd.f32 %v894, %v984
    %v986 = vpop.f32.mrf.mxu0
    %987 = vmatprep.mubr.f32.mxu0 0.0
    %988 = vmatmul.mubr.f32.gmra.mxu0 %v906
    %v989 = vpop.f32.mrf.mxu0
    %v990 = vadd.f32 %v894, %v989
    %v991 = vpop.f32.mrf.mxu0
    %992 = vdwg.mxu0
    %v993 = vadd.f32 %v603, %v975
    %v994 = vadd.f32 %v604, %v980
    %v995 = vadd.f32 %v605, %v985
    %v996 = vadd.f32 %v606, %v990
    %v997 = vld [vmem:[%s31] sm:$0x1]
    %v998 = vld [vmem:[%s33] sm:$0x1]
    %v999 = vld [vmem:[%s35] sm:$0xff]
    %v1000 = vld [vmem:[%s35 + $0x8] sm:$0xff]
    %v1001 = vld [vmem:[%s37] sm:$0xff]
    %v1002 = vld [vmem:[%s37 + $0x8] sm:$0xff]
    %v1003 = vld [vmem:[%s39] sm:$0xff]
    %v1004 = vld [vmem:[%s39 + $0x8] sm:$0xff]
    %v1005 = vld [vmem:[%s41] sm:$0xff]
    %v1006 = vld [vmem:[%s41 + $0x8] sm:$0xff]
    %v1007 = vld [vmem:[%s43] sm:$0x1]
    %v1008 = vld [vmem:[%s45] sm:$0x1]
    %v1009 = vld [vmem:[%s47] sm:$0xff]
    %v1010 = vld [vmem:[%s47 + $0x8] sm:$0xff]
    %v1011 = vld [vmem:[%s47 + $0x10] sm:$0xff]
    %v1012 = vld [vmem:[%s47 + $0x18] sm:$0xff]
    %v1013 = vld [vmem:[%s49] sm:$0x1]
    %v1014 = vld [vmem:[%s51] sm:$0xff]
    %v1015 = vld [vmem:[%s51 + $0x8] sm:$0xff]
    %v1016 = vld [vmem:[%s51 + $0x10] sm:$0xff]
    %v1017 = vld [vmem:[%s51 + $0x18] sm:$0xff]
    %v1018 = vld [vmem:[%s51 + $0x20] sm:$0xff]
    %v1019 = vld [vmem:[%s51 + $0x28] sm:$0xff]
    %v1020 = vld [vmem:[%s51 + $0x30] sm:$0xff]
    %v1021 = vld [vmem:[%s51 + $0x38] sm:$0xff]
    %v1022 = vld [vmem:[%s53] sm:$0x1]
    %v1023 = vsel %vm274, %v993, 0.0
    %1024 = vadd.xlane.f32.xlu0 %v1023
    %v1025 = vpop.xlane.xlu0 %1024
    %v1026 = vsel %vm274, %v994, 0.0
    %1027 = vadd.xlane.f32.xlu0 %v1026
    %v1028 = vpop.xlane.xlu0 %1027
    %v1029 = vsel %vm274, %v995, 0.0
    %1030 = vadd.xlane.f32.xlu0 %v1029
    %v1031 = vpop.xlane.xlu0 %1030
    %v1032 = vsel %vm274, %v996, 0.0
    %1033 = vadd.xlane.f32.xlu0 %v1032
    %v1034 = vpop.xlane.xlu0 %1033
    %v1035 = vmul.f32 %v1025, %v287
    %v1036 = vmul.f32 %v1028, %v287
    %v1037 = vmul.f32 %v1031, %v287
    %v1038 = vmul.f32 %v1034, %v287
    %v1039 = vsub.f32 %v993, %v1035
    %v1040 = vsub.f32 %v994, %v1036
    %v1041 = vsub.f32 %v995, %v1037
    %v1042 = vsub.f32 %v996, %v1038
    %v1043 = vmul.f32 %v1039, %v1039
    %v1044 = vmul.f32 %v1040, %v1040
    %v1045 = vmul.f32 %v1041, %v1041
    %v1046 = vmul.f32 %v1042, %v1042
    %v1047 = vsel %vm274, %v1043, 0.0
    %1048 = vadd.xlane.f32.xlu0 %v1047
    %v1049 = vpop.xlane.xlu0 %1048
    %v1050 = vsel %vm274, %v1044, 0.0
    %1051 = vadd.xlane.f32.xlu0 %v1050
    %v1052 = vpop.xlane.xlu0 %1051
    %v1053 = vsel %vm274, %v1045, 0.0
    %1054 = vadd.xlane.f32.xlu0 %v1053
    %v1055 = vpop.xlane.xlu0 %1054
    %v1056 = vsel %vm274, %v1046, 0.0
    %1057 = vadd.xlane.f32.xlu0 %v1056
    %v1058 = vpop.xlane.xlu0 %1057
    %v1059 = vmul.f32 %v1049, %v287
    %v1060 = vmul.f32 %v1052, %v287
    %v1061 = vmul.f32 %v1055, %v287
    %v1062 = vmul.f32 %v1058, %v287
    %v1063 = vadd.f32 %v1059, 1e-05
    %v1064 = vadd.f32 %v1060, 1e-05
    %v1065 = vadd.f32 %v1061, 1e-05
    %v1066 = vadd.f32 %v1062, 1e-05
    %v1067 = vrsqrt.pop %v1063
    %v1068 = vrsqrt.pop %v1064
    %v1069 = vrsqrt.pop %v1065
    %v1070 = vrsqrt.pop %v1066
    %v1071 = vmul.f32 %v1039, %v1067
    %v1072 = vmul.f32 %v1040, %v1068
    %v1073 = vmul.f32 %v1041, %v1069
    %v1074 = vmul.f32 %v1042, %v1070
    %v1076 = vlaneseq
    %v1077 = vshrl.u32 %v1076, 7
    %v1078 = vsub.s32 0, %v1077
    %v1079 = vrot.slane %v997, %v1078
    %v1081 = vmul.f32 %v1071, %v1079
    %v1082 = vmul.f32 %v1072, %v1079
    %v1083 = vmul.f32 %v1073, %v1079
    %v1084 = vmul.f32 %v1074, %v1079
    %v1086 = vlaneseq
    %v1087 = vshrl.u32 %v1086, 7
    %v1088 = vsub.s32 0, %v1087
    %v1089 = vrot.slane %v998, %v1088
    %v1091 = vadd.f32 %v1081, %v1089
    %v1092 = vadd.f32 %v1082, %v1089
    %v1093 = vadd.f32 %v1083, %v1089
    %v1094 = vadd.f32 %v1084, %v1089
    %1097 = vrot.lane.b32.xlu0 %v1093, 32
    %v1098 = vpop.permute.xlu0 %1097
    %1099 = vrot.lane.b32.xlu0 %v1094, 32
    %v1100 = vpop.permute.xlu0 %1099
    %v1103 = vsel %vm274, %v1091, %v1098
    %v1104 = vsel %vm274, %v1092, %v1100
    %1106 = vset.pattern.permute.xlu0 0
    %1107 = vperm.xlu0 %1106, %v1001
    %v1108 = vpop.permute.xlu0 %1107
    %1111 = vset.pattern.permute.xlu0 0
    %1112 = vperm.xlu0 %1111, %v1002
    %v1113 = vpop.permute.xlu0 %1112
    %v1116 = vsel %vm368, %v999, 0
    %v1119 = vsel %vm368, %v1000, 0
    %1121 = vmatprep.subr.mxu0 0.0
    %1122 = vmatpush1.msra.mxu0 0.0
    %1123 = vmatprep.subr.mxu0 0.0
    %1124 = vmatpush1.msra.mxu0 0.0
    %1125 = vmatprep.subr.mxu0 0.0
    %1126 = vmatpush1.msra.mxu0 0.0
    %1127 = vmatprep.subr.mxu0 0.0
    %1128 = vmatpush1.msra.mxu0 0.0
    %1129 = vmatprep.subr.mxu0 0.0
    %1130 = vmatpush1.msra.mxu0 0.0
    %1131 = vmatprep.subr.mxu0 0.0
    %1132 = vmatpush1.msra.mxu0 0.0
    %1133 = vmatprep.subr.mxu0 0.0
    %1134 = vmatpush1.msra.mxu0 0.0
    %1135 = vmatprep.subr.mxu0 0.0
    %1136 = vmatpush1.msra.mxu0 0.0
    %1137 = vmatprep.subr.mxu0 0.0
    %1138 = vmatpush1.msra.mxu0 0.0
    %1139 = vmatprep.subr.mxu0 0.0
    %1140 = vmatpush1.msra.mxu0 0.0
    %1141 = vmatprep.subr.mxu0 0.0
    %1142 = vmatpush1.msra.mxu0 0.0
    %1143 = vmatprep.subr.mxu0 0.0
    %1144 = vmatpush1.msra.mxu0 0.0
    %1145 = vmatprep.subr.mxu0 0.0
    %1146 = vmatpush1.msra.mxu0 0.0
    %1147 = vmatprep.subr.mxu0 0.0
    %1148 = vmatpush1.msra.mxu0 0.0
    %1149 = vmatprep.subr.mxu0 0.0
    %1150 = vmatpush1.msra.mxu0 %v1104
    %1151 = vmatprep.subr.mxu0 0.0
    %1152 = vmatpush1.msra.mxu0 %v1103
    %1153 = vmatprep.subr.mxu0 0.0
    %1154 = vmatpush2.msra.mxu0 0.0
    %1155 = vmatprep.subr.mxu0 0.0
    %1156 = vmatpush2.msra.mxu0 0.0
    %1157 = vmatprep.subr.mxu0 0.0
    %1158 = vmatpush2.msra.mxu0 0.0
    %1159 = vmatprep.subr.mxu0 0.0
    %1160 = vmatpush2.msra.mxu0 0.0
    %1161 = vmatprep.subr.mxu0 0.0
    %1162 = vmatpush2.msra.mxu0 0.0
    %1163 = vmatprep.subr.mxu0 0.0
    %1164 = vmatpush2.msra.mxu0 0.0
    %1165 = vmatprep.subr.mxu0 0.0
    %1166 = vmatpush2.msra.mxu0 0.0
    %1167 = vmatprep.subr.mxu0 0.0
    %1168 = vmatpush2.msra.mxu0 0.0
    %1169 = vmatprep.subr.mxu0 0.0
    %1170 = vmatpush2.msra.mxu0 0.0
    %1171 = vmatprep.subr.mxu0 0.0
    %1172 = vmatpush2.msra.mxu0 0.0
    %1173 = vmatprep.subr.mxu0 0.0
    %1174 = vmatpush2.msra.mxu0 0.0
    %1175 = vmatprep.subr.mxu0 0.0
    %1176 = vmatpush2.msra.mxu0 0.0
    %1177 = vmatprep.subr.mxu0 0.0
    %1178 = vmatpush2.msra.mxu0 0.0
    %1179 = vmatprep.subr.mxu0 0.0
    %1180 = vmatpush2.msra.mxu0 0.0
    %1181 = vmatprep.subr.mxu0 0.0
    %1182 = vmatpush2.msra.mxu0 0.0
    %1183 = vmatprep.subr.mxu0 0.0
    %1184 = vmatpush2.msra.mxu0 0.0
    %1185 = vmatprep.mubr.f32.mxu0 0.0
    %1186 = vmatmul.mubr.f32.gmra.mxu0 %v1116
    %v1187 = vpop.f32.mrf.mxu0
    %v1188 = vadd.f32 %v1108, %v1187
    %v1189 = vpop.f32.mrf.mxu0
    %1190 = vmatprep.mubr.f32.mxu0 0.0
    %1191 = vmatmul.mubr.f32.gmra.mxu0 %v1119
    %v1192 = vpop.f32.mrf.mxu0
    %v1193 = vadd.f32 %v1113, %v1192
    %v1194 = vpop.f32.mrf.mxu0
    %1195 = vdwg.mxu0
    %v1196 = vmul.f32 %v1188, 0.5
    %v1197 = vmul.f32 %v1193, 0.5
    %v1198 = vmul.f32 %v1188, 0.70710677
    %v1199 = vmul.f32 %v1193, 0.70710677
    %vm1200 = vcmp.ge.f32.partialorder %v1198, 0.0
    %vm1201 = vcmp.ge.f32.partialorder %v1199, 0.0
    %v1202 = vsel %vm1200, 1.0, -1.0
    %v1203 = vsel %vm1201, 1.0, -1.0
    %v1204 = vand.u32 2147483647, %v1198
    %v1205 = vand.u32 2147483647, %v1199
    %v1206 = vmul.f32 %v1204, 0.3275911
    %v1207 = vmul.f32 %v1205, 0.3275911
    %v1208 = vadd.f32 %v1206, 1.0
    %v1209 = vadd.f32 %v1207, 1.0
    %v1210 = vrcp.pop %v1208
    %v1211 = vmul.f32 1.0, %v1210
    %v1212 = vrcp.pop %v1209
    %v1213 = vmul.f32 1.0, %v1212
    %v1214 = vmul.f32 %v1211, 1.0614054
    %v1215 = vmul.f32 %v1213, 1.0614054
    %v1216 = vadd.f32 %v1214, -1.4531521
    %v1217 = vadd.f32 %v1215, -1.4531521
    %v1218 = vmul.f32 %v1216, %v1211
    %v1219 = vmul.f32 %v1217, %v1213
    %v1220 = vadd.f32 %v1218, 1.4214138
    %v1221 = vadd.f32 %v1219, 1.4214138
    %v1222 = vmul.f32 %v1220, %v1211
    %v1223 = vmul.f32 %v1221, %v1213
    %v1224 = vadd.f32 %v1222, -0.28449672
    %v1225 = vadd.f32 %v1223, -0.28449672
    %v1226 = vmul.f32 %v1224, %v1211
    %v1227 = vmul.f32 %v1225, %v1213
    %v1228 = vadd.f32 %v1226, 0.2548296
    %v1229 = vadd.f32 %v1227, 0.2548296
    %v1230 = vmul.f32 %v1228, %v1211
    %v1231 = vmul.f32 %v1229, %v1213
    %v1232 = vsub.f32 0.0, %v1204
    %v1233 = vsub.f32 0.0, %v1205
    %v1234 = vmul.f32 %v1232, %v1204
    %v1235 = vmul.f32 %v1233, %v1205
    %v1236 = vmul.f32 %v1234, 1.442695
    %v1237 = vpow.pop %v1236
    %v1238 = vmul.f32 %v1235, 1.442695
    %v1239 = vpow.pop %v1238
    %v1240 = vmul.f32 %v1230, %v1237
    %v1241 = vmul.f32 %v1231, %v1239
    %v1242 = vsub.f32 1.0, %v1240
    %v1243 = vsub.f32 1.0, %v1241
    %v1244 = vmul.f32 %v1202, %v1242
    %v1245 = vmul.f32 %v1203, %v1243
    %v1246 = vadd.f32 %v1244, 1.0
    %v1247 = vadd.f32 %v1245, 1.0
    %v1248 = vmul.f32 %v1196, %v1246
    %v1249 = vmul.f32 %v1197, %v1247
    %1251 = vset.pattern.permute.xlu0 0
    %1252 = vperm.xlu0 %1251, %v1005
    %v1253 = vpop.permute.xlu0 %1252
    %1256 = vset.pattern.permute.xlu0 0
    %1257 = vperm.xlu0 %1256, %v1006
    %v1258 = vpop.permute.xlu0 %1257
    %v1261 = vsel %vm368, %v1003, 0
    %v1264 = vsel %vm368, %v1004, 0
    %1266 = vmatprep.subr.mxu0 0.0
    %1267 = vmatpush1.msra.mxu0 0.0
    %1268 = vmatprep.subr.mxu0 0.0
    %1269 = vmatpush1.msra.mxu0 0.0
    %1270 = vmatprep.subr.mxu0 0.0
    %1271 = vmatpush1.msra.mxu0 0.0
    %1272 = vmatprep.subr.mxu0 0.0
    %1273 = vmatpush1.msra.mxu0 0.0
    %1274 = vmatprep.subr.mxu0 0.0
    %1275 = vmatpush1.msra.mxu0 0.0
    %1276 = vmatprep.subr.mxu0 0.0
    %1277 = vmatpush1.msra.mxu0 0.0
    %1278 = vmatprep.subr.mxu0 0.0
    %1279 = vmatpush1.msra.mxu0 0.0
    %1280 = vmatprep.subr.mxu0 0.0
    %1281 = vmatpush1.msra.mxu0 0.0
    %1282 = vmatprep.subr.mxu0 0.0
    %1283 = vmatpush1.msra.mxu0 0.0
    %1284 = vmatprep.subr.mxu0 0.0
    %1285 = vmatpush1.msra.mxu0 0.0
    %1286 = vmatprep.subr.mxu0 0.0
    %1287 = vmatpush1.msra.mxu0 0.0
    %1288 = vmatprep.subr.mxu0 0.0
    %1289 = vmatpush1.msra.mxu0 0.0
    %1290 = vmatprep.subr.mxu0 0.0
    %1291 = vmatpush1.msra.mxu0 0.0
    %1292 = vmatprep.subr.mxu0 0.0
    %1293 = vmatpush1.msra.mxu0 0.0
    %1294 = vmatprep.subr.mxu0 0.0
    %1295 = vmatpush1.msra.mxu0 %v1249
    %1296 = vmatprep.subr.mxu0 0.0
    %1297 = vmatpush1.msra.mxu0 %v1248
    %1298 = vmatprep.subr.mxu0 0.0
    %1299 = vmatpush2.msra.mxu0 0.0
    %1300 = vmatprep.subr.mxu0 0.0
    %1301 = vmatpush2.msra.mxu0 0.0
    %1302 = vmatprep.subr.mxu0 0.0
    %1303 = vmatpush2.msra.mxu0 0.0
    %1304 = vmatprep.subr.mxu0 0.0
    %1305 = vmatpush2.msra.mxu0 0.0
    %1306 = vmatprep.subr.mxu0 0.0
    %1307 = vmatpush2.msra.mxu0 0.0
    %1308 = vmatprep.subr.mxu0 0.0
    %1309 = vmatpush2.msra.mxu0 0.0
    %1310 = vmatprep.subr.mxu0 0.0
    %1311 = vmatpush2.msra.mxu0 0.0
    %1312 = vmatprep.subr.mxu0 0.0
    %1313 = vmatpush2.msra.mxu0 0.0
    %1314 = vmatprep.subr.mxu0 0.0
    %1315 = vmatpush2.msra.mxu0 0.0
    %1316 = vmatprep.subr.mxu0 0.0
    %1317 = vmatpush2.msra.mxu0 0.0
    %1318 = vmatprep.subr.mxu0 0.0
    %1319 = vmatpush2.msra.mxu0 0.0
    %1320 = vmatprep.subr.mxu0 0.0
    %1321 = vmatpush2.msra.mxu0 0.0
    %1322 = vmatprep.subr.mxu0 0.0
    %1323 = vmatpush2.msra.mxu0 0.0
    %1324 = vmatprep.subr.mxu0 0.0
    %1325 = vmatpush2.msra.mxu0 0.0
    %1326 = vmatprep.subr.mxu0 0.0
    %1327 = vmatpush2.msra.mxu0 0.0
    %1328 = vmatprep.subr.mxu0 0.0
    %1329 = vmatpush2.msra.mxu0 0.0
    %1330 = vmatprep.mubr.f32.mxu0 0.0
    %1331 = vmatmul.mubr.f32.gmra.mxu0 %v1261
    %v1332 = vpop.f32.mrf.mxu0
    %v1333 = vadd.f32 %v1253, %v1332
    %v1334 = vpop.f32.mrf.mxu0
    %1335 = vmatprep.mubr.f32.mxu0 0.0
    %1336 = vmatmul.mubr.f32.gmra.mxu0 %v1264
    %v1337 = vpop.f32.mrf.mxu0
    %v1338 = vadd.f32 %v1258, %v1337
    %v1339 = vpop.f32.mrf.mxu0
    %1340 = vdwg.mxu0
    %1343 = vrot.lane.b32.xlu0 %v1333, 96
    %v1344 = vpop.permute.xlu0 %1343
    %1345 = vrot.lane.b32.xlu0 %v1338, 96
    %v1346 = vpop.permute.xlu0 %1345
    %v1349 = vadd.f32 %v993, %v1333
    %v1350 = vadd.f32 %v994, %v1338
    %v1351 = vadd.f32 %v995, %v1344
    %v1352 = vadd.f32 %v996, %v1346
    %v1353 = vsel %vm274, %v1349, 0.0
    %1354 = vadd.xlane.f32.xlu0 %v1353
    %v1355 = vpop.xlane.xlu0 %1354
    %v1356 = vsel %vm274, %v1350, 0.0
    %1357 = vadd.xlane.f32.xlu0 %v1356
    %v1358 = vpop.xlane.xlu0 %1357
    %v1359 = vsel %vm274, %v1351, 0.0
    %1360 = vadd.xlane.f32.xlu0 %v1359
    %v1361 = vpop.xlane.xlu0 %1360
    %v1362 = vsel %vm274, %v1352, 0.0
    %1363 = vadd.xlane.f32.xlu0 %v1362
    %v1364 = vpop.xlane.xlu0 %1363
    %v1365 = vmul.f32 %v1355, %v287
    %v1366 = vmul.f32 %v1358, %v287
    %v1367 = vmul.f32 %v1361, %v287
    %v1368 = vmul.f32 %v1364, %v287
    %v1369 = vsub.f32 %v1349, %v1365
    %v1370 = vsub.f32 %v1350, %v1366
    %v1371 = vsub.f32 %v1351, %v1367
    %v1372 = vsub.f32 %v1352, %v1368
    %v1373 = vmul.f32 %v1369, %v1369
    %v1374 = vmul.f32 %v1370, %v1370
    %v1375 = vmul.f32 %v1371, %v1371
    %v1376 = vmul.f32 %v1372, %v1372
    %v1377 = vsel %vm274, %v1373, 0.0
    %1378 = vadd.xlane.f32.xlu0 %v1377
    %v1379 = vpop.xlane.xlu0 %1378
    %v1380 = vsel %vm274, %v1374, 0.0
    %1381 = vadd.xlane.f32.xlu0 %v1380
    %v1382 = vpop.xlane.xlu0 %1381
    %v1383 = vsel %vm274, %v1375, 0.0
    %1384 = vadd.xlane.f32.xlu0 %v1383
    %v1385 = vpop.xlane.xlu0 %1384
    %v1386 = vsel %vm274, %v1376, 0.0
    %1387 = vadd.xlane.f32.xlu0 %v1386
    %v1388 = vpop.xlane.xlu0 %1387
    %v1389 = vmul.f32 %v1379, %v287
    %v1390 = vmul.f32 %v1382, %v287
    %v1391 = vmul.f32 %v1385, %v287
    %v1392 = vmul.f32 %v1388, %v287
    %v1393 = vadd.f32 %v1389, 1e-05
    %v1394 = vadd.f32 %v1390, 1e-05
    %v1395 = vadd.f32 %v1391, 1e-05
    %v1396 = vadd.f32 %v1392, 1e-05
    %v1397 = vrsqrt.pop %v1393
    %v1398 = vrsqrt.pop %v1394
    %v1399 = vrsqrt.pop %v1395
    %v1400 = vrsqrt.pop %v1396
    %v1401 = vmul.f32 %v1369, %v1397
    %v1402 = vmul.f32 %v1370, %v1398
    %v1403 = vmul.f32 %v1371, %v1399
    %v1404 = vmul.f32 %v1372, %v1400
    %v1406 = vlaneseq
    %v1407 = vshrl.u32 %v1406, 7
    %v1408 = vsub.s32 0, %v1407
    %v1409 = vrot.slane %v1007, %v1408
    %v1411 = vmul.f32 %v1401, %v1409
    %v1412 = vmul.f32 %v1402, %v1409
    %v1413 = vmul.f32 %v1403, %v1409
    %v1414 = vmul.f32 %v1404, %v1409
    %v1416 = vlaneseq
    %v1417 = vshrl.u32 %v1416, 7
    %v1418 = vsub.s32 0, %v1417
    %v1419 = vrot.slane %v1008, %v1418
    %v1421 = vadd.f32 %v1411, %v1419
    %v1422 = vadd.f32 %v1412, %v1419
    %v1423 = vadd.f32 %v1413, %v1419
    %v1424 = vadd.f32 %v1414, %v1419
    %v1426 = vlaneseq
    %v1427 = vshrl.u32 %v1426, 7
    %v1428 = vsub.s32 0, %v1427
    %v1429 = vrot.slane %v1013, %v1428
    %v1432 = vsel %vm274, %v1421, 0
    %v1435 = vsel %vm274, %v1422, 0
    %v1438 = vsel %vm274, %v1423, 0
    %v1441 = vsel %vm274, %v1424, 0
    %1443 = vmatprep.subr.mxu0 0.0
    %1444 = vmatpush1.msra.mxu0 0.0
    %1445 = vmatprep.subr.mxu0 0.0
    %1446 = vmatpush1.msra.mxu0 0.0
    %1447 = vmatprep.subr.mxu0 0.0
    %1448 = vmatpush1.msra.mxu0 0.0
    %1449 = vmatprep.subr.mxu0 0.0
    %1450 = vmatpush1.msra.mxu0 0.0
    %1451 = vmatprep.subr.mxu0 0.0
    %1452 = vmatpush1.msra.mxu0 0.0
    %1453 = vmatprep.subr.mxu0 0.0
    %1454 = vmatpush1.msra.mxu0 0.0
    %1455 = vmatprep.subr.mxu0 0.0
    %1456 = vmatpush1.msra.mxu0 0.0
    %1457 = vmatprep.subr.mxu0 0.0
    %1458 = vmatpush1.msra.mxu0 0.0
    %1459 = vmatprep.subr.mxu0 0.0
    %1460 = vmatpush1.msra.mxu0 0.0
    %1461 = vmatprep.subr.mxu0 0.0
    %1462 = vmatpush1.msra.mxu0 0.0
    %1463 = vmatprep.subr.mxu0 0.0
    %1464 = vmatpush1.msra.mxu0 0.0
    %1465 = vmatprep.subr.mxu0 0.0
    %1466 = vmatpush1.msra.mxu0 0.0
    %1467 = vmatprep.subr.mxu0 0.0
    %1468 = vmatpush1.msra.mxu0 %v1012
    %1469 = vmatprep.subr.mxu0 0.0
    %1470 = vmatpush1.msra.mxu0 %v1011
    %1471 = vmatprep.subr.mxu0 0.0
    %1472 = vmatpush1.msra.mxu0 %v1010
    %1473 = vmatprep.subr.mxu0 0.0
    %1474 = vmatpush1.msra.mxu0 %v1009
    %1475 = vmatprep.subr.mxu0 0.0
    %1476 = vmatpush2.msra.mxu0 0.0
    %1477 = vmatprep.subr.mxu0 0.0
    %1478 = vmatpush2.msra.mxu0 0.0
    %1479 = vmatprep.subr.mxu0 0.0
    %1480 = vmatpush2.msra.mxu0 0.0
    %1481 = vmatprep.subr.mxu0 0.0
    %1482 = vmatpush2.msra.mxu0 0.0
    %1483 = vmatprep.subr.mxu0 0.0
    %1484 = vmatpush2.msra.mxu0 0.0
    %1485 = vmatprep.subr.mxu0 0.0
    %1486 = vmatpush2.msra.mxu0 0.0
    %1487 = vmatprep.subr.mxu0 0.0
    %1488 = vmatpush2.msra.mxu0 0.0
    %1489 = vmatprep.subr.mxu0 0.0
    %1490 = vmatpush2.msra.mxu0 0.0
    %1491 = vmatprep.subr.mxu0 0.0
    %1492 = vmatpush2.msra.mxu0 0.0
    %1493 = vmatprep.subr.mxu0 0.0
    %1494 = vmatpush2.msra.mxu0 0.0
    %1495 = vmatprep.subr.mxu0 0.0
    %1496 = vmatpush2.msra.mxu0 0.0
    %1497 = vmatprep.subr.mxu0 0.0
    %1498 = vmatpush2.msra.mxu0 0.0
    %1499 = vmatprep.subr.mxu0 0.0
    %1500 = vmatpush2.msra.mxu0 0.0
    %1501 = vmatprep.subr.mxu0 0.0
    %1502 = vmatpush2.msra.mxu0 0.0
    %1503 = vmatprep.subr.mxu0 0.0
    %1504 = vmatpush2.msra.mxu0 0.0
    %1505 = vmatprep.subr.mxu0 0.0
    %1506 = vmatpush2.msra.mxu0 0.0
    %1507 = vmatprep.mubr.f32.mxu0 0.0
    %1508 = vmatmul.mubr.f32.gmra.mxu0 %v1432
    %v1509 = vpop.f32.mrf.mxu0
    %v1510 = vadd.f32 %v1429, %v1509
    %v1511 = vpop.f32.mrf.mxu0
    %1512 = vmatprep.mubr.f32.mxu0 0.0
    %1513 = vmatmul.mubr.f32.gmra.mxu0 %v1435
    %v1514 = vpop.f32.mrf.mxu0
    %v1515 = vadd.f32 %v1429, %v1514
    %v1516 = vpop.f32.mrf.mxu0
    %1517 = vmatprep.mubr.f32.mxu0 0.0
    %1518 = vmatmul.mubr.f32.gmra.mxu0 %v1438
    %v1519 = vpop.f32.mrf.mxu0
    %v1520 = vadd.f32 %v1429, %v1519
    %v1521 = vpop.f32.mrf.mxu0
    %1522 = vmatprep.mubr.f32.mxu0 0.0
    %1523 = vmatmul.mubr.f32.gmra.mxu0 %v1441
    %v1524 = vpop.f32.mrf.mxu0
    %v1525 = vadd.f32 %v1429, %v1524
    %v1526 = vpop.f32.mrf.mxu0
    %1527 = vdwg.mxu0
    %v1528 = vmul.f32 %v1510, 0.5
    %v1529 = vmul.f32 %v1515, 0.5
    %v1530 = vmul.f32 %v1520, 0.5
    %v1531 = vmul.f32 %v1525, 0.5
    %v1532 = vmul.f32 %v1510, 0.70710677
    %v1533 = vmul.f32 %v1515, 0.70710677
    %v1534 = vmul.f32 %v1520, 0.70710677
    %v1535 = vmul.f32 %v1525, 0.70710677
    %vm1536 = vcmp.ge.f32.partialorder %v1532, 0.0
    %vm1537 = vcmp.ge.f32.partialorder %v1533, 0.0
    %vm1538 = vcmp.ge.f32.partialorder %v1534, 0.0
    %vm1539 = vcmp.ge.f32.partialorder %v1535, 0.0
    %v1540 = vsel %vm1536, 1.0, -1.0
    %v1541 = vsel %vm1537, 1.0, -1.0
    %v1542 = vsel %vm1538, 1.0, -1.0
    %v1543 = vsel %vm1539, 1.0, -1.0
    %v1544 = vand.u32 2147483647, %v1532
    %v1545 = vand.u32 2147483647, %v1533
    %v1546 = vand.u32 2147483647, %v1534
    %v1547 = vand.u32 2147483647, %v1535
    %v1548 = vmul.f32 %v1544, 0.3275911
    %v1549 = vmul.f32 %v1545, 0.3275911
    %v1550 = vmul.f32 %v1546, 0.3275911
    %v1551 = vmul.f32 %v1547, 0.3275911
    %v1552 = vadd.f32 %v1548, 1.0
    %v1553 = vadd.f32 %v1549, 1.0
    %v1554 = vadd.f32 %v1550, 1.0
    %v1555 = vadd.f32 %v1551, 1.0
    %v1556 = vrcp.pop %v1552
    %v1557 = vmul.f32 1.0, %v1556
    %v1558 = vrcp.pop %v1553
    %v1559 = vmul.f32 1.0, %v1558
    %v1560 = vrcp.pop %v1554
    %v1561 = vmul.f32 1.0, %v1560
    %v1562 = vrcp.pop %v1555
    %v1563 = vmul.f32 1.0, %v1562
    %v1564 = vmul.f32 %v1557, 1.0614054
    %v1565 = vmul.f32 %v1559, 1.0614054
    %v1566 = vmul.f32 %v1561, 1.0614054
    %v1567 = vmul.f32 %v1563, 1.0614054
    %v1568 = vadd.f32 %v1564, -1.4531521
    %v1569 = vadd.f32 %v1565, -1.4531521
    %v1570 = vadd.f32 %v1566, -1.4531521
    %v1571 = vadd.f32 %v1567, -1.4531521
    %v1572 = vmul.f32 %v1568, %v1557
    %v1573 = vmul.f32 %v1569, %v1559
    %v1574 = vmul.f32 %v1570, %v1561
    %v1575 = vmul.f32 %v1571, %v1563
    %v1576 = vadd.f32 %v1572, 1.4214138
    %v1577 = vadd.f32 %v1573, 1.4214138
    %v1578 = vadd.f32 %v1574, 1.4214138
    %v1579 = vadd.f32 %v1575, 1.4214138
    %v1580 = vmul.f32 %v1576, %v1557
    %v1581 = vmul.f32 %v1577, %v1559
    %v1582 = vmul.f32 %v1578, %v1561
    %v1583 = vmul.f32 %v1579, %v1563
    %v1584 = vadd.f32 %v1580, -0.28449672
    %v1585 = vadd.f32 %v1581, -0.28449672
    %v1586 = vadd.f32 %v1582, -0.28449672
    %v1587 = vadd.f32 %v1583, -0.28449672
    %v1588 = vmul.f32 %v1584, %v1557
    %v1589 = vmul.f32 %v1585, %v1559
    %v1590 = vmul.f32 %v1586, %v1561
    %v1591 = vmul.f32 %v1587, %v1563
    %v1592 = vadd.f32 %v1588, 0.2548296
    %v1593 = vadd.f32 %v1589, 0.2548296
    %v1594 = vadd.f32 %v1590, 0.2548296
    %v1595 = vadd.f32 %v1591, 0.2548296
    %v1596 = vmul.f32 %v1592, %v1557
    %v1597 = vmul.f32 %v1593, %v1559
    %v1598 = vmul.f32 %v1594, %v1561
    %v1599 = vmul.f32 %v1595, %v1563
    %v1600 = vsub.f32 0.0, %v1544
    %v1601 = vsub.f32 0.0, %v1545
    %v1602 = vsub.f32 0.0, %v1546
    %v1603 = vsub.f32 0.0, %v1547
    %v1604 = vmul.f32 %v1600, %v1544
    %v1605 = vmul.f32 %v1601, %v1545
    %v1606 = vmul.f32 %v1602, %v1546
    %v1607 = vmul.f32 %v1603, %v1547
    %v1608 = vmul.f32 %v1604, 1.442695
    %v1609 = vpow.pop %v1608
    %v1610 = vmul.f32 %v1605, 1.442695
    %v1611 = vpow.pop %v1610
    %v1612 = vmul.f32 %v1606, 1.442695
    %v1613 = vpow.pop %v1612
    %v1614 = vmul.f32 %v1607, 1.442695
    %v1615 = vpow.pop %v1614
    %v1616 = vmul.f32 %v1596, %v1609
    %v1617 = vmul.f32 %v1597, %v1611
    %v1618 = vmul.f32 %v1598, %v1613
    %v1619 = vmul.f32 %v1599, %v1615
    %v1620 = vsub.f32 1.0, %v1616
    %v1621 = vsub.f32 1.0, %v1617
    %v1622 = vsub.f32 1.0, %v1618
    %v1623 = vsub.f32 1.0, %v1619
    %v1624 = vmul.f32 %v1540, %v1620
    %v1625 = vmul.f32 %v1541, %v1621
    %v1626 = vmul.f32 %v1542, %v1622
    %v1627 = vmul.f32 %v1543, %v1623
    %v1628 = vadd.f32 %v1624, 1.0
    %v1629 = vadd.f32 %v1625, 1.0
    %v1630 = vadd.f32 %v1626, 1.0
    %v1631 = vadd.f32 %v1627, 1.0
    %v1632 = vmul.f32 %v1528, %v1628
    %v1633 = vmul.f32 %v1529, %v1629
    %v1634 = vmul.f32 %v1530, %v1630
    %v1635 = vmul.f32 %v1531, %v1631
    %v1637 = vlaneseq
    %v1638 = vshrl.u32 %v1637, 7
    %v1639 = vsub.s32 0, %v1638
    %v1640 = vrot.slane %v1022, %v1639
    %v1643 = vsel %vm150, %v1632, 0
    %v1646 = vsel %vm150, %v1633, 0
    %v1649 = vsel %vm150, %v1634, 0
    %v1652 = vsel %vm150, %v1635, 0
    %1654 = vmatprep.subr.mxu0 0.0
    %1655 = vmatpush1.msra.mxu0 0.0
    %1656 = vmatprep.subr.mxu0 0.0
    %1657 = vmatpush1.msra.mxu0 0.0
    %1658 = vmatprep.subr.mxu0 0.0
    %1659 = vmatpush1.msra.mxu0 0.0
    %1660 = vmatprep.subr.mxu0 0.0
    %1661 = vmatpush1.msra.mxu0 0.0
    %1662 = vmatprep.subr.mxu0 0.0
    %1663 = vmatpush1.msra.mxu0 0.0
    %1664 = vmatprep.subr.mxu0 0.0
    %1665 = vmatpush1.msra.mxu0 0.0
    %1666 = vmatprep.subr.mxu0 0.0
    %1667 = vmatpush1.msra.mxu0 0.0
    %1668 = vmatprep.subr.mxu0 0.0
    %1669 = vmatpush1.msra.mxu0 0.0
    %1670 = vmatprep.subr.mxu0 0.0
    %1671 = vmatpush1.msra.mxu0 %v1021
    %1672 = vmatprep.subr.mxu0 0.0
    %1673 = vmatpush1.msra.mxu0 %v1020
    %1674 = vmatprep.subr.mxu0 0.0
    %1675 = vmatpush1.msra.mxu0 %v1019
    %1676 = vmatprep.subr.mxu0 0.0
    %1677 = vmatpush1.msra.mxu0 %v1018
    %1678 = vmatprep.subr.mxu0 0.0
    %1679 = vmatpush1.msra.mxu0 %v1017
    %1680 = vmatprep.subr.mxu0 0.0
    %1681 = vmatpush1.msra.mxu0 %v1016
    %1682 = vmatprep.subr.mxu0 0.0
    %1683 = vmatpush1.msra.mxu0 %v1015
    %1684 = vmatprep.subr.mxu0 0.0
    %1685 = vmatpush1.msra.mxu0 %v1014
    %1686 = vmatprep.subr.mxu0 0.0
    %1687 = vmatpush2.msra.mxu0 0.0
    %1688 = vmatprep.subr.mxu0 0.0
    %1689 = vmatpush2.msra.mxu0 0.0
    %1690 = vmatprep.subr.mxu0 0.0
    %1691 = vmatpush2.msra.mxu0 0.0
    %1692 = vmatprep.subr.mxu0 0.0
    %1693 = vmatpush2.msra.mxu0 0.0
    %1694 = vmatprep.subr.mxu0 0.0
    %1695 = vmatpush2.msra.mxu0 0.0
    %1696 = vmatprep.subr.mxu0 0.0
    %1697 = vmatpush2.msra.mxu0 0.0
    %1698 = vmatprep.subr.mxu0 0.0
    %1699 = vmatpush2.msra.mxu0 0.0
    %1700 = vmatprep.subr.mxu0 0.0
    %1701 = vmatpush2.msra.mxu0 0.0
    %1702 = vmatprep.subr.mxu0 0.0
    %1703 = vmatpush2.msra.mxu0 0.0
    %1704 = vmatprep.subr.mxu0 0.0
    %1705 = vmatpush2.msra.mxu0 0.0
    %1706 = vmatprep.subr.mxu0 0.0
    %1707 = vmatpush2.msra.mxu0 0.0
    %1708 = vmatprep.subr.mxu0 0.0
    %1709 = vmatpush2.msra.mxu0 0.0
    %1710 = vmatprep.subr.mxu0 0.0
    %1711 = vmatpush2.msra.mxu0 0.0
    %1712 = vmatprep.subr.mxu0 0.0
    %1713 = vmatpush2.msra.mxu0 0.0
    %1714 = vmatprep.subr.mxu0 0.0
    %1715 = vmatpush2.msra.mxu0 0.0
    %1716 = vmatprep.subr.mxu0 0.0
    %1717 = vmatpush2.msra.mxu0 0.0
    %1718 = vmatprep.mubr.f32.mxu0 0.0
    %1719 = vmatmul.mubr.f32.gmra.mxu0 %v1643
    %v1720 = vpop.f32.mrf.mxu0
    %v1721 = vadd.f32 %v1640, %v1720
    %v1722 = vpop.f32.mrf.mxu0
    %1723 = vmatprep.mubr.f32.mxu0 0.0
    %1724 = vmatmul.mubr.f32.gmra.mxu0 %v1646
    %v1725 = vpop.f32.mrf.mxu0
    %v1726 = vadd.f32 %v1640, %v1725
    %v1727 = vpop.f32.mrf.mxu0
    %1728 = vmatprep.mubr.f32.mxu0 0.0
    %1729 = vmatmul.mubr.f32.gmra.mxu0 %v1649
    %v1730 = vpop.f32.mrf.mxu0
    %v1731 = vadd.f32 %v1640, %v1730
    %v1732 = vpop.f32.mrf.mxu0
    %1733 = vmatprep.mubr.f32.mxu0 0.0
    %1734 = vmatmul.mubr.f32.gmra.mxu0 %v1652
    %v1735 = vpop.f32.mrf.mxu0
    %v1736 = vadd.f32 %v1640, %v1735
    %v1737 = vpop.f32.mrf.mxu0
    %1738 = vdwg.mxu0
    %v1739 = vadd.f32 %v1349, %v1721
    %v1740 = vadd.f32 %v1350, %v1726
    %v1741 = vadd.f32 %v1351, %v1731
    %v1742 = vadd.f32 %v1352, %v1736
    %v1743 = vld [vmem:[%s55] sm:$0x1]
    %v1744 = vld [vmem:[%s57] sm:$0x1]
    %v1745 = vld [vmem:[%s59] sm:$0xff]
    %v1746 = vld [vmem:[%s59 + $0x8] sm:$0xff]
    %v1747 = vld [vmem:[%s59 + $0x10] sm:$0xff]
    %v1748 = vld [vmem:[%s59 + $0x18] sm:$0xff]
    %v1749 = vld [vmem:[%s61] sm:$0x1]
    %v1750 = vsel %vm274, %v1739, 0.0
    %1751 = vadd.xlane.f32.xlu0 %v1750
    %v1752 = vpop.xlane.xlu0 %1751
    %v1753 = vsel %vm274, %v1740, 0.0
    %1754 = vadd.xlane.f32.xlu0 %v1753
    %v1755 = vpop.xlane.xlu0 %1754
    %v1756 = vsel %vm274, %v1741, 0.0
    %1757 = vadd.xlane.f32.xlu0 %v1756
    %v1758 = vpop.xlane.xlu0 %1757
    %v1759 = vsel %vm274, %v1742, 0.0
    %1760 = vadd.xlane.f32.xlu0 %v1759
    %v1761 = vpop.xlane.xlu0 %1760
    %v1762 = vmul.f32 %v1752, %v287
    %v1763 = vmul.f32 %v1755, %v287
    %v1764 = vmul.f32 %v1758, %v287
    %v1765 = vmul.f32 %v1761, %v287
    %v1766 = vsub.f32 %v1739, %v1762
    %v1767 = vsub.f32 %v1740, %v1763
    %v1768 = vsub.f32 %v1741, %v1764
    %v1769 = vsub.f32 %v1742, %v1765
    %v1770 = vmul.f32 %v1766, %v1766
    %v1771 = vmul.f32 %v1767, %v1767
    %v1772 = vmul.f32 %v1768, %v1768
    %v1773 = vmul.f32 %v1769, %v1769
    %v1774 = vsel %vm274, %v1770, 0.0
    %1775 = vadd.xlane.f32.xlu0 %v1774
    %v1776 = vpop.xlane.xlu0 %1775
    %v1777 = vsel %vm274, %v1771, 0.0
    %1778 = vadd.xlane.f32.xlu0 %v1777
    %v1779 = vpop.xlane.xlu0 %1778
    %v1780 = vsel %vm274, %v1772, 0.0
    %1781 = vadd.xlane.f32.xlu0 %v1780
    %v1782 = vpop.xlane.xlu0 %1781
    %v1783 = vsel %vm274, %v1773, 0.0
    %1784 = vadd.xlane.f32.xlu0 %v1783
    %v1785 = vpop.xlane.xlu0 %1784
    %v1786 = vmul.f32 %v1776, %v287
    %v1787 = vmul.f32 %v1779, %v287
    %v1788 = vmul.f32 %v1782, %v287
    %v1789 = vmul.f32 %v1785, %v287
    %v1790 = vadd.f32 %v1786, 1e-05
    %v1791 = vadd.f32 %v1787, 1e-05
    %v1792 = vadd.f32 %v1788, 1e-05
    %v1793 = vadd.f32 %v1789, 1e-05
    %v1794 = vrsqrt.pop %v1790
    %v1795 = vrsqrt.pop %v1791
    %v1796 = vrsqrt.pop %v1792
    %v1797 = vrsqrt.pop %v1793
    %v1798 = vmul.f32 %v1766, %v1794
    %v1799 = vmul.f32 %v1767, %v1795
    %v1800 = vmul.f32 %v1768, %v1796
    %v1801 = vmul.f32 %v1769, %v1797
    %v1803 = vlaneseq
    %v1804 = vshrl.u32 %v1803, 7
    %v1805 = vsub.s32 0, %v1804
    %v1806 = vrot.slane %v1743, %v1805
    %v1808 = vmul.f32 %v1798, %v1806
    %v1809 = vmul.f32 %v1799, %v1806
    %v1810 = vmul.f32 %v1800, %v1806
    %v1811 = vmul.f32 %v1801, %v1806
    %v1813 = vlaneseq
    %v1814 = vshrl.u32 %v1813, 7
    %v1815 = vsub.s32 0, %v1814
    %v1816 = vrot.slane %v1744, %v1815
    %v1818 = vadd.f32 %v1808, %v1816
    %v1819 = vadd.f32 %v1809, %v1816
    %v1820 = vadd.f32 %v1810, %v1816
    %v1821 = vadd.f32 %v1811, %v1816
    %v1822 = vsel %vm274, %v1818, 0.0
    %v1823 = vsel %vm274, %v1819, 0.0
    %v1824 = vadd.f32 %v1822, %v1823
    %v1825 = vrot.slane %v1824, 4
    %v1826 = vadd.f32 %v1824, %v1825
    %v1827 = vrot.slane %v1826, 2
    %v1828 = vadd.f32 %v1826, %v1827
    %v1829 = vrot.slane %v1828, 1
    %v1830 = vadd.f32 %v1828, %v1829
    %v1831 = vrcp.pop 16.0
    %v1832 = vmul.f32 %v1830, %v1831
    %v1833 = vsel %vm274, %v1820, 0.0
    %v1834 = vsel %vm274, %v1821, 0.0
    %v1835 = vadd.f32 %v1833, %v1834
    %v1836 = vrot.slane %v1835, 4
    %v1837 = vadd.f32 %v1835, %v1836
    %v1838 = vrot.slane %v1837, 2
    %v1839 = vadd.f32 %v1837, %v1838
    %v1840 = vrot.slane %v1839, 1
    %v1841 = vadd.f32 %v1839, %v1840
    %v1842 = vmul.f32 %v1841, %v1831
    %vm1843 = vcmask 1040384
    %v1844 = vsel %vm1843, %v1832, %v1842
    %v1846 = vlaneseq
    %v1847 = vshrl.u32 %v1846, 7
    %v1848 = vsub.s32 0, %v1847
    %v1849 = vrot.slane %v1749, %v1848
    %v1852 = vsel %vm274, %v1844, 0
    %1854 = vmatprep.subr.mxu0 0.0
    %1855 = vmatpush1.msra.mxu0 0.0
    %1856 = vmatprep.subr.mxu0 0.0
    %1857 = vmatpush1.msra.mxu0 0.0
    %1858 = vmatprep.subr.mxu0 0.0
    %1859 = vmatpush1.msra.mxu0 0.0
    %1860 = vmatprep.subr.mxu0 0.0
    %1861 = vmatpush1.msra.mxu0 0.0
    %1862 = vmatprep.subr.mxu0 0.0
    %1863 = vmatpush1.msra.mxu0 0.0
    %1864 = vmatprep.subr.mxu0 0.0
    %1865 = vmatpush1.msra.mxu0 0.0
    %1866 = vmatprep.subr.mxu0 0.0
    %1867 = vmatpush1.msra.mxu0 0.0
    %1868 = vmatprep.subr.mxu0 0.0
    %1869 = vmatpush1.msra.mxu0 0.0
    %1870 = vmatprep.subr.mxu0 0.0
    %1871 = vmatpush1.msra.mxu0 0.0
    %1872 = vmatprep.subr.mxu0 0.0
    %1873 = vmatpush1.msra.mxu0 0.0
    %1874 = vmatprep.subr.mxu0 0.0
    %1875 = vmatpush1.msra.mxu0 0.0
    %1876 = vmatprep.subr.mxu0 0.0
    %1877 = vmatpush1.msra.mxu0 0.0
    %1878 = vmatprep.subr.mxu0 0.0
    %1879 = vmatpush1.msra.mxu0 %v1748
    %1880 = vmatprep.subr.mxu0 0.0
    %1881 = vmatpush1.msra.mxu0 %v1747
    %1882 = vmatprep.subr.mxu0 0.0
    %1883 = vmatpush1.msra.mxu0 %v1746
    %1884 = vmatprep.subr.mxu0 0.0
    %1885 = vmatpush1.msra.mxu0 %v1745
    %1886 = vmatprep.subr.mxu0 0.0
    %1887 = vmatpush2.msra.mxu0 0.0
    %1888 = vmatprep.subr.mxu0 0.0
    %1889 = vmatpush2.msra.mxu0 0.0
    %1890 = vmatprep.subr.mxu0 0.0
    %1891 = vmatpush2.msra.mxu0 0.0
    %1892 = vmatprep.subr.mxu0 0.0
    %1893 = vmatpush2.msra.mxu0 0.0
    %1894 = vmatprep.subr.mxu0 0.0
    %1895 = vmatpush2.msra.mxu0 0.0
    %1896 = vmatprep.subr.mxu0 0.0
    %1897 = vmatpush2.msra.mxu0 0.0
    %1898 = vmatprep.subr.mxu0 0.0
    %1899 = vmatpush2.msra.mxu0 0.0
    %1900 = vmatprep.subr.mxu0 0.0
    %1901 = vmatpush2.msra.mxu0 0.0
    %1902 = vmatprep.subr.mxu0 0.0
    %1903 = vmatpush2.msra.mxu0 0.0
    %1904 = vmatprep.subr.mxu0 0.0
    %1905 = vmatpush2.msra.mxu0 0.0
    %1906 = vmatprep.subr.mxu0 0.0
    %1907 = vmatpush2.msra.mxu0 0.0
    %1908 = vmatprep.subr.mxu0 0.0
    %1909 = vmatpush2.msra.mxu0 0.0
    %1910 = vmatprep.subr.mxu0 0.0
    %1911 = vmatpush2.msra.mxu0 0.0
    %1912 = vmatprep.subr.mxu0 0.0
    %1913 = vmatpush2.msra.mxu0 0.0
    %1914 = vmatprep.subr.mxu0 0.0
    %1915 = vmatpush2.msra.mxu0 0.0
    %1916 = vmatprep.subr.mxu0 0.0
    %1917 = vmatpush2.msra.mxu0 0.0
    %1918 = vmatprep.mubr.f32.mxu0 0.0
    %1919 = vmatmul.mubr.f32.gmra.mxu0 %v1852
    %v1920 = vpop.f32.mrf.mxu0
    %v1921 = vadd.f32 %v1849, %v1920
    %v1922 = vpop.f32.mrf.mxu0
    %1923 = vdwg.mxu0
    %vm1924 = vcmask 74752
    %v1925 = vsel %vm1924, %v1921, -inf
    %1926 = vmax.xlane.f32.xlu0 %v1925
    %v1927 = vpop.xlane.xlu0 %1926
    %v1928 = vsub.f32 %v1921, %v1927
    %v1929 = vmul.f32 %v1928, 1.442695
    %v1930 = vpow.pop %v1929
    %v1931 = vsel %vm1924, %v1930, 0.0
    %1932 = vadd.xlane.f32.xlu0 %v1931
    %v1933 = vpop.xlane.xlu0 %1932
    %v1934 = vrcp.pop %v1933
    %v1935 = vmul.f32 %v1930, %v1934
    %1936 = vst.msk [vmem:[#allocation2] sm:$0x3] %vm1924, %v1935
    // Predicated region
    $region126: #{tpu_custom_call.1} parent=1 // pred_check
      _
    $region127: #{tpu_custom_call.1} parent=1 // pred_check_branch
      %1938 = sbr.rel (0) target = $region129
    $region128: #{tpu_custom_call.1} parent=1 // pred_region
      %s1940 = ssub.s32 32, 32
      %1941 = vsyncadd [#allocation3], %s1940
      %s1943 = sshll.u32 [#allocation2], 4
      %s1944 = int_to_ptr.vmem [resolvable:$true] %s1943
      %1946 = dma.vmem_to_hbm [thread:$0]  %s1944, 32, %s63, [#allocation3]
    $region129: #{tpu_custom_call.1} parent=1 // pred_fallthru
      _
    // Predicated region
    $region130: #{tpu_custom_call.1} parent=1 // pred_check
      _
    $region131: #{tpu_custom_call.1} parent=1 // pred_check_branch
      %1948 = sbr.rel (0) target = $region133
    $region132: #{tpu_custom_call.1} parent=1 // pred_region
      %1949 = dma.done [#allocation3], 32
    $region133: #{tpu_custom_call.1} parent=1 // pred_fallthru
      _
    %1950 = vsyncpa [#allocation3], 1

</llo_original>
